<compile_context>
chip_gen: v6e
topology: v6e:2x2x1
jax: 0.10.0
libtpu: 0.0.40
codegen_flags: <defaults>
</compile_context>

<pallas_src>
import functools
import math

import jax
import jax.numpy as jnp
import numpy as np
from jax import lax
from jax.experimental import pallas as pl
from jax.experimental.pallas import tpu as pltpu


# --------------------------------------------------------------------------- #
# Conv-as-GEMM kernel (bias folded into the weight matrix / patch matrix)
# --------------------------------------------------------------------------- #
def _conv_gemm_kernel(w_ref, p_ref, o_ref):
    # w_ref: (O, K+1)   p_ref: (K+1, L)   o_ref: (O, L)   (L = B*T*Ho*Wo, lane-dense)
    o_ref[...] = jnp.dot(
        w_ref[...], p_ref[...], preferred_element_type=jnp.float32
    ).astype(o_ref.dtype)


def _gemm_bias_folded(w_aug, p_aug, out_dtype):
    O, K = w_aug.shape
    K2, L = p_aug.shape
    assert K == K2
    return pl.pallas_call(
        _conv_gemm_kernel,
        out_shape=jax.ShapeDtypeStruct((O, L), out_dtype),
        grid=(1,),
        in_specs=[
            pl.BlockSpec((O, K), lambda i: (0, 0)),
            pl.BlockSpec((K, L), lambda i: (0, 0)),
        ],
        out_specs=pl.BlockSpec((O, L), lambda i: (0, 0)),
        compiler_params=pltpu.CompilerParams(dimension_semantics=("arbitrary",)),
    )(w_aug, p_aug)


def _im2col_aug(xf, KH, KW, stride, padding):
    """xf: (N, C, H, W) -> augmented patches (C*KH*KW + 1, N*Ho*Wo), Ho, Wo.

    Row ordering is C-major then (kh, kw), matching weight.reshape(O, C*KH*KW).
    Last row is ones (bias fold).  Pure XLA glue (pad / slice / stack), no FLOPs.
    """
    N, C, H, W = xf.shape
    sh, sw = stride
    ph, pw = padding
    xp = jnp.pad(xf, ((0, 0), (0, 0), (ph, ph), (pw, pw)))
    Ho = (H + 2 * ph - KH) // sh + 1
    Wo = (W + 2 * pw - KW) // sw + 1

    taps = []
    for kh in range(KH):
        for kw in range(KW):
            taps.append(xp[:, :, kh:kh + sh * Ho:sh, kw:kw + sw * Wo:sw])  # (N,C,Ho,Wo)
    p = jnp.stack(taps, axis=0)                # (KH*KW, N, C, Ho, Wo)
    p = p.transpose(2, 0, 1, 3, 4)             # (C, KH*KW, N, Ho, Wo)  -> C-major rows
    L = N * Ho * Wo
    p = p.reshape(C * KH * KW, L)
    p = jnp.concatenate([p, jnp.ones((1, L), p.dtype)], axis=0)  # bias row
    return p, Ho, Wo


def _aug_weight(weight, bias):
    # (O, C, KH, KW), (O,) -> (O, C*KH*KW + 1) with bias as last column
    O, C, KH, KW = weight.shape
    return jnp.concatenate([weight.reshape(O, C * KH * KW), bias.reshape(O, 1)], axis=1)


# --------------------------------------------------------------------------- #
# Multi-head attention kernel: all B*n_head heads in one grid step
# --------------------------------------------------------------------------- #
def _mha_kernel(q_ref, k_ref, v_ref, o_ref, *, scale, causal):
    q = q_ref[...]                                   # (BH, T, D)
    k = k_ref[...]
    v = v_ref[...]
    s = jnp.einsum("btd,bsd->bts", q, k,
                   preferred_element_type=jnp.float32) * scale   # (BH, T, T)
    if causal:
        row = lax.broadcasted_iota(jnp.int32, s.shape, 1)
        col = lax.broadcasted_iota(jnp.int32, s.shape, 2)
        s = jnp.where(col <= row, s, -jnp.inf)
    m = jnp.max(s, axis=-1, keepdims=True)
    e = jnp.exp(s - m)
    p = e / jnp.sum(e, axis=-1, keepdims=True)
    o_ref[...] = jnp.einsum("bts,bsd->btd", p.astype(v.dtype), v,
                            preferred_element_type=jnp.float32).astype(o_ref.dtype)


def _mha(q, k, v, scale, causal):
    BH, T, D = q.shape
    spec = pl.BlockSpec((BH, T, D), lambda i: (0, 0, 0))
    return pl.pallas_call(
        functools.partial(_mha_kernel, scale=scale, causal=causal),
        out_shape=jax.ShapeDtypeStruct((BH, T, D), q.dtype),
        grid=(1,),
        in_specs=[spec, spec, spec],
        out_specs=spec,
        compiler_params=pltpu.CompilerParams(dimension_semantics=("arbitrary",)),
    )(q, k, v)


# --------------------------------------------------------------------------- #
# Full CnnSelfAttention forward
# --------------------------------------------------------------------------- #
def cnn_self_attention_forward(params, x, *, n_head, kernel_size=(3, 3),
                               stride=(1, 1), padding=(1, 1), is_causal=False):
    """x: (B, T, C, H, W) -> (B, T, O, H', W').  Inference semantics."""
    B, T, C, H, W = x.shape
    KH, KW = kernel_size
    O = params["query_w"].shape[0]
    assert O % n_head == 0
    hc = O // n_head
    N = B * T

    # ---- fused q/k/v convs: one im2col, one GEMM with stacked weights -------
    xf = x.reshape(N, C, H, W)
    patches, Ho, Wo = _im2col_aug(xf, KH, KW, stride, padding)
    w_qkv = jnp.concatenate(
        [_aug_weight(params["query_w"], params["query_b"]),
         _aug_weight(params["key_w"], params["key_b"]),
         _aug_weight(params["value_w"], params["value_b"])], axis=0)   # (3O, K+1)
    qkv = _gemm_bias_folded(w_qkv, patches, x.dtype)                   # (3O, N*Ho*Wo)

    def to_heads(t):  # t: (O, L) with L laid out as (B, T, Ho, Wo)
        t = t.reshape(n_head, hc, B, T, Ho, Wo)
        t = t.transpose(2, 0, 3, 1, 4, 5)          # (B, nh, T, hc, Ho, Wo)
        return t.reshape(B * n_head, T, hc * Ho * Wo)

    q = to_heads(qkv[0:O])
    k = to_heads(qkv[O:2 * O])
    v = to_heads(qkv[2 * O:3 * O])

    # ---- batched multi-head attention ---------------------------------------
    scale = 1.0 / math.sqrt(hc * Ho * Wo)
    # TODO(synk): attn_drop / resid_drop are inference-mode identity; training-mode
    # dropout is not implemented.
    y = _mha(q, k, v, scale, is_causal)            # (B*nh, T, hc*Ho*Wo)

    # back to [B, T, O, Ho, Wo] (PyTorch: transpose(1,2).contiguous().view(...))
    y = y.reshape(B, n_head, T, hc, Ho, Wo).transpose(0, 2, 1, 3, 4, 5)
    y = y.reshape(N, O, Ho, Wo)

    # ---- output projection conv: one GEMM ------------------------------------
    patches2, Ho2, Wo2 = _im2col_aug(y, KH, KW, stride, padding)
    w_o = _aug_weight(params["proj_w"], params["proj_b"])
    out = _gemm_bias_folded(w_o, patches2, x.dtype)                    # (O, N*Ho2*Wo2)
    out = out.reshape(O, B, T, Ho2, Wo2).transpose(1, 2, 0, 3, 4)      # (B, T, O, H', W')
    return out


# --------------------------------------------------------------------------- #
# Pure-JAX reference (for the in-script correctness check)
# --------------------------------------------------------------------------- #
def _ref_forward(params, x, n_head):
    B, T, C, H, W = x.shape
    N = B * T
    O = params["query_w"].shape[0]
    hc = O // n_head

    def conv(x4, w, b):
        return lax.conv_general_dilated(
            x4, w, window_strides=(1, 1), padding=((1, 1), (1, 1)),
            dimension_numbers=("NCHW", "OIHW", "NCHW"),
            precision=lax.Precision.HIGHEST) + b[None, :, None, None]

    xf = x.reshape(N, C, H, W)
    cq = conv(xf, params["query_w"], params["query_b"]).reshape(B, T, O, H, W)
    ck = conv(xf, params["key_w"], params["key_b"]).reshape(B, T, O, H, W)
    cv = conv(xf, params["value_w"], params["value_b"]).reshape(B, T, O, H, W)

    def heads(t):
        t = t.reshape(B, T, n_head, hc, H, W).transpose(0, 2, 1, 3, 4, 5)
        return t.reshape(B, n_head, T, hc * H * W)

    q, k, v = heads(cq), heads(ck), heads(cv)
    att = jnp.einsum("bhtd,bhsd->bhts", q, k,
                     precision=lax.Precision.HIGHEST) / math.sqrt(hc * H * W)
    att = jax.nn.softmax(att, axis=-1)
    y = jnp.einsum("bhts,bhsd->bhtd", att, v, precision=lax.Precision.HIGHEST)
    y = y.reshape(B, n_head, T, hc, H, W).transpose(0, 2, 1, 3, 4, 5).reshape(N, O, H, W)
    y = conv(y, params["proj_w"], params["proj_b"])
    return y.reshape(B, T, O, H, W)


# --------------------------------------------------------------------------- #
if __name__ == "__main__":
    # CnnSelfAttention(H=16, W=16, C=4, T=8, output_channels=16, n_head=8,
    #                  kernel_size=(3,3), stride=(1,1), padding=(1,1))
    B, T, C, H, W = 2, 8, 4, 16, 16
    O, n_head, KH, KW = 16, 8, 3, 3

    key = jax.random.PRNGKey(0)
    ks = jax.random.split(key, 9)

    def conv_init(kw_, kb_, out_c, in_c):
        bound = 1.0 / math.sqrt(in_c * KH * KW)     # PyTorch-like init scale
        w = jax.random.uniform(kw_, (out_c, in_c, KH, KW), jnp.float32, -bound, bound)
        b = jax.random.uniform(kb_, (out_c,), jnp.float32, -bound, bound)
        return w, b

    qw, qb = conv_init(ks[0], ks[1], O, C)
    kw, kb = conv_init(ks[2], ks[3], O, C)
    vw, vb = conv_init(ks[4], ks[5], O, C)
    pw, pb = conv_init(ks[6], ks[7], O, O)
    params = dict(query_w=qw, query_b=qb, key_w=kw, key_b=kb,
                  value_w=vw, value_b=vb, proj_w=pw, proj_b=pb)

    x = jax.random.normal(ks[8], (B, T, C, H, W), dtype=jnp.float32)

    out = jax.block_until_ready(
        cnn_self_attention_forward(params, x, n_head=n_head))
    assert out.shape == (B, T, O, H, W), out.shape

    ref = jax.block_until_ready(_ref_forward(params, x, n_head))
    np.testing.assert_allclose(np.asarray(out), np.asarray(ref),
                               rtol=1e-3, atol=1e-3)

    print("KERNEL_OK")
</pallas_src>

<mosaic_0001>
module attributes {stable_mosaic.version = 11 : i64} {
  func.func @_conv_gemm_kernel(%arg0: i32, %arg1: memref<48x37xf32, #tpu.memory_space<vmem>>, %arg2: memref<37x4096xf32, #tpu.memory_space<vmem>>, %arg3: memref<48x4096xf32, #tpu.memory_space<vmem>>) attributes {dimension_semantics = [#tpu.dimension_semantics<arbitrary>], iteration_bounds = array<i64: 1>, scalar_prefetch = 0 : i64, scratch_operands = 0 : i64, tpu.core_type = #tpu.core_type<tc>, window_params = [{pipeline_mode = #tpu.pipeline_mode<synchronous>, transform_indices = @transform_0, window_bounds = array<i64: 48, 37>}, {pipeline_mode = #tpu.pipeline_mode<synchronous>, transform_indices = @transform_1, window_bounds = array<i64: 37, 4096>}, {pipeline_mode = #tpu.pipeline_mode<synchronous>, transform_indices = @transform_2, window_bounds = array<i64: 48, 4096>}]} {
    %c0 = arith.constant 0 : index
    %c0_0 = arith.constant 0 : index
    %0 = vector.load %arg1[%c0, %c0_0] : memref<48x37xf32, #tpu.memory_space<vmem>>, vector<48x37xf32>
    %c0_1 = arith.constant 0 : index
    %c0_2 = arith.constant 0 : index
    %1 = vector.load %arg2[%c0_1, %c0_2] : memref<37x4096xf32, #tpu.memory_space<vmem>>, vector<37x4096xf32>
    %cst = arith.constant dense<0.000000e+00> : vector<48x4096xf32>
    %2 = tpu.matmul %0, %1, %cst {dimension_numbers = #tpu.dot_dimension_numbers<[1], [0], [0], [1], [0, 0, 1, 1], [], []>} : vector<48x37xf32>, vector<37x4096xf32>, vector<48x4096xf32> -> vector<48x4096xf32>
    %c0_3 = arith.constant 0 : index
    %c0_4 = arith.constant 0 : index
    %3 = vector.load %arg3[%c0_3, %c0_4] : memref<48x4096xf32, #tpu.memory_space<vmem>>, vector<48x4096xf32>
    tpu.vector_store %arg3[%c0_3, %c0_4], %2 {strides = array<i32>} : memref<48x4096xf32, #tpu.memory_space<vmem>>, vector<48x4096xf32>,
    return
  }
  func.func @transform_0(%arg0: i32) -> (i32, i32) {
    %c0_i32 = arith.constant 0 : i32
    %c0_i32_0 = arith.constant 0 : i32
    %c0_i32_1 = arith.constant 0 : i32
    return %c0_i32, %c0_i32_0 : i32, i32
  }
  func.func @transform_1(%arg0: i32) -> (i32, i32) {
    %c0_i32 = arith.constant 0 : i32
    %c0_i32_0 = arith.constant 0 : i32
    %c0_i32_1 = arith.constant 0 : i32
    return %c0_i32, %c0_i32_0 : i32, i32
  }
  func.func @transform_2(%arg0: i32) -> (i32, i32) {
    %c0_i32 = arith.constant 0 : i32
    %c0_i32_0 = arith.constant 0 : i32
    %c0_i32_1 = arith.constant 0 : i32
    return %c0_i32, %c0_i32_0 : i32, i32
  }
}

</mosaic_0001>

<llo_original>
// kernel: tpu_custom_call.1
$region0: #{tpu_custom_call.1}
  #allocation0 [shape = 'u32[]', space=smem, size = 0x4, offset = 0x4, fixed_abs, tag = 'smem constant byte address 0x4 - core index']
  #allocation1 [shape = 'u32[144,128]{1,0:T(1,128)}', space=vmem, size = 0x12000, scoped, tag = 'internal scratch']
  %s0 = inlined_call_operand.vmem [shape: f32[48,37], index: 0, kind: input, shape index: {}]
  %s1 = inlined_call_operand.hbm [shape: f32[37,4096], index: 1, kind: input, shape index: {}]
  %s2 = inlined_call_operand.hbm [shape: f32[48,4096], index: 2, kind: output, shape index: {}]
  %s3 = sld [smem:[#allocation0]]
  $region22: #{tpu_custom_call.1} parent=0
    _
  %s5 = ssub.s32 1, %s3
  %s6 = scalar_select 0, %s5, %s3
  $region1: #{tpu_custom_call.1} parent=0
    #allocation2 [shape = 'u8[655360]{0}', space=vmem, size = 0xa0000, scoped, tag = 'input window, operand 1, single buffered']
    #allocation3 [shape = 's32[1]{0}', space=sflag, size = 0x4, scoped, tag = 'scoped memory for tpu_custom_call.1']
    #allocation4 [shape = 's32[1]{0}', space=sflag, size = 0x4, scoped, tag = 'scoped memory for tpu_custom_call.1']
    #allocation5 [shape = 'u8[786432]{0}', space=vmem, size = 0xc0000, scoped, tag = 'output window, operand 0, single buffered']
    %7 = vsyncpa [#allocation3], 0
    %8 = vsyncpa [#allocation4], 0
    // Predicated region
    $region2: #{tpu_custom_call.1} parent=1 // pred_check
      _
    $region3: #{tpu_custom_call.1} parent=1 // pred_check_branch
      %10 = sbr.rel (0) target = $region5
    $region4: #{tpu_custom_call.1} parent=1 // pred_region
      _
    $region5: #{tpu_custom_call.1} parent=1 // pred_fallthru
      _
    // Predicated region
    $region6: #{tpu_custom_call.1} parent=1 // pred_check
      _
    $region7: #{tpu_custom_call.1} parent=1 // pred_check_branch
      %12 = sbr.rel (0) target = $region9
    $region8: #{tpu_custom_call.1} parent=1 // pred_region
      %s14 = ssub.s32 20480, 20480
      %15 = vsyncadd [#allocation3], %s14
      %s16 = sshll.u32 [#allocation2], 4
      %s17 = int_to_ptr.vmem [resolvable:$true] %s16
      %22 = dma.hbm_to_vmem [thread:$0]  %s1, 20480, %s17, [#allocation3], 4096, 4096, 256
    $region9: #{tpu_custom_call.1} parent=1 // pred_fallthru
      _
    // Predicated region
    $region10: #{tpu_custom_call.1} parent=1 // pred_check
      _
    $region11: #{tpu_custom_call.1} parent=1 // pred_check_branch
      %24 = sbr.rel (0) target = $region13
    $region12: #{tpu_custom_call.1} parent=1 // pred_region
      %25 = dma.done [#allocation3], 20480
    $region13: #{tpu_custom_call.1} parent=1 // pred_fallthru
      _
    %v26 = vld [vmem:[%s0] sm:$0xff]
    %v27 = vld [vmem:[%s0 + $0x8] sm:$0xff]
    %v28 = vld [vmem:[%s0 + $0x10] sm:$0xff]
    %v29 = vld [vmem:[%s0 + $0x18] sm:$0xff]
    %v30 = vld [vmem:[%s0 + $0x20] sm:$0xff]
    %v31 = vld [vmem:[%s0 + $0x28] sm:$0xff]
    %v32 = vld [vmem:[#allocation2] sm:$0xff]
    %v33 = vld [vmem:[#allocation2 + $0x8] sm:$0xff]
    %v34 = vld [vmem:[#allocation2 + $0x10] sm:$0xff]
    %v35 = vld [vmem:[#allocation2 + $0x18] sm:$0xff]
    %v36 = vld [vmem:[#allocation2 + $0x20] sm:$0xff]
    %v37 = vld [vmem:[#allocation2 + $0x28] sm:$0xff]
    %v38 = vld [vmem:[#allocation2 + $0x30] sm:$0xff]
    %v39 = vld [vmem:[#allocation2 + $0x38] sm:$0xff]
    %v40 = vld [vmem:[#allocation2 + $0x40] sm:$0xff]
    %v41 = vld [vmem:[#allocation2 + $0x48] sm:$0xff]
    %v42 = vld [vmem:[#allocation2 + $0x50] sm:$0xff]
    %v43 = vld [vmem:[#allocation2 + $0x58] sm:$0xff]
    %v44 = vld [vmem:[#allocation2 + $0x60] sm:$0xff]
    %v45 = vld [vmem:[#allocation2 + $0x68] sm:$0xff]
    %v46 = vld [vmem:[#allocation2 + $0x70] sm:$0xff]
    %v47 = vld [vmem:[#allocation2 + $0x78] sm:$0xff]
    %v48 = vld [vmem:[#allocation2 + $0x80] sm:$0xff]
    %v49 = vld [vmem:[#allocation2 + $0x88] sm:$0xff]
    %v50 = vld [vmem:[#allocation2 + $0x90] sm:$0xff]
    %v51 = vld [vmem:[#allocation2 + $0x98] sm:$0xff]
    %v52 = vld [vmem:[#allocation2 + $0xa0] sm:$0xff]
    %v53 = vld [vmem:[#allocation2 + $0xa8] sm:$0xff]
    %v54 = vld [vmem:[#allocation2 + $0xb0] sm:$0xff]
    %v55 = vld [vmem:[#allocation2 + $0xb8] sm:$0xff]
    %v56 = vld [vmem:[#allocation2 + $0xc0] sm:$0xff]
    %v57 = vld [vmem:[#allocation2 + $0xc8] sm:$0xff]
    %v58 = vld [vmem:[#allocation2 + $0xd0] sm:$0xff]
    %v59 = vld [vmem:[#allocation2 + $0xd8] sm:$0xff]
    %v60 = vld [vmem:[#allocation2 + $0xe0] sm:$0xff]
    %v61 = vld [vmem:[#allocation2 + $0xe8] sm:$0xff]
    %v62 = vld [vmem:[#allocation2 + $0xf0] sm:$0xff]
    %v63 = vld [vmem:[#allocation2 + $0xf8] sm:$0xff]
    %v64 = vld [vmem:[#allocation2 + $0x100] sm:$0xff]
    %v65 = vld [vmem:[#allocation2 + $0x108] sm:$0xff]
    %v66 = vld [vmem:[#allocation2 + $0x110] sm:$0xff]
    %v67 = vld [vmem:[#allocation2 + $0x118] sm:$0xff]
    %v68 = vld [vmem:[#allocation2 + $0x120] sm:$0xff]
    %v69 = vld [vmem:[#allocation2 + $0x128] sm:$0xff]
    %v70 = vld [vmem:[#allocation2 + $0x130] sm:$0xff]
    %v71 = vld [vmem:[#allocation2 + $0x138] sm:$0xff]
    %v72 = vld [vmem:[#allocation2 + $0x140] sm:$0xff]
    %v73 = vld [vmem:[#allocation2 + $0x148] sm:$0xff]
    %v74 = vld [vmem:[#allocation2 + $0x150] sm:$0xff]
    %v75 = vld [vmem:[#allocation2 + $0x158] sm:$0xff]
    %v76 = vld [vmem:[#allocation2 + $0x160] sm:$0xff]
    %v77 = vld [vmem:[#allocation2 + $0x168] sm:$0xff]
    %v78 = vld [vmem:[#allocation2 + $0x170] sm:$0xff]
    %v79 = vld [vmem:[#allocation2 + $0x178] sm:$0xff]
    %v80 = vld [vmem:[#allocation2 + $0x180] sm:$0xff]
    %v81 = vld [vmem:[#allocation2 + $0x188] sm:$0xff]
    %v82 = vld [vmem:[#allocation2 + $0x190] sm:$0xff]
    %v83 = vld [vmem:[#allocation2 + $0x198] sm:$0xff]
    %v84 = vld [vmem:[#allocation2 + $0x1a0] sm:$0xff]
    %v85 = vld [vmem:[#allocation2 + $0x1a8] sm:$0xff]
    %v86 = vld [vmem:[#allocation2 + $0x1b0] sm:$0xff]
    %v87 = vld [vmem:[#allocation2 + $0x1b8] sm:$0xff]
    %v88 = vld [vmem:[#allocation2 + $0x1c0] sm:$0xff]
    %v89 = vld [vmem:[#allocation2 + $0x1c8] sm:$0xff]
    %v90 = vld [vmem:[#allocation2 + $0x1d0] sm:$0xff]
    %v91 = vld [vmem:[#allocation2 + $0x1d8] sm:$0xff]
    %v92 = vld [vmem:[#allocation2 + $0x1e0] sm:$0xff]
    %v93 = vld [vmem:[#allocation2 + $0x1e8] sm:$0xff]
    %v94 = vld [vmem:[#allocation2 + $0x1f0] sm:$0xff]
    %v95 = vld [vmem:[#allocation2 + $0x1f8] sm:$0xff]
    %v96 = vld [vmem:[#allocation2 + $0x200] sm:$0xff]
    %v97 = vld [vmem:[#allocation2 + $0x208] sm:$0xff]
    %v98 = vld [vmem:[#allocation2 + $0x210] sm:$0xff]
    %v99 = vld [vmem:[#allocation2 + $0x218] sm:$0xff]
    %v100 = vld [vmem:[#allocation2 + $0x220] sm:$0xff]
    %v101 = vld [vmem:[#allocation2 + $0x228] sm:$0xff]
    %v102 = vld [vmem:[#allocation2 + $0x230] sm:$0xff]
    %v103 = vld [vmem:[#allocation2 + $0x238] sm:$0xff]
    %v104 = vld [vmem:[#allocation2 + $0x240] sm:$0xff]
    %v105 = vld [vmem:[#allocation2 + $0x248] sm:$0xff]
    %v106 = vld [vmem:[#allocation2 + $0x250] sm:$0xff]
    %v107 = vld [vmem:[#allocation2 + $0x258] sm:$0xff]
    %v108 = vld [vmem:[#allocation2 + $0x260] sm:$0xff]
    %v109 = vld [vmem:[#allocation2 + $0x268] sm:$0xff]
    %v110 = vld [vmem:[#allocation2 + $0x270] sm:$0xff]
    %v111 = vld [vmem:[#allocation2 + $0x278] sm:$0xff]
    %v112 = vld [vmem:[#allocation2 + $0x280] sm:$0xff]
    %v113 = vld [vmem:[#allocation2 + $0x288] sm:$0xff]
    %v114 = vld [vmem:[#allocation2 + $0x290] sm:$0xff]
    %v115 = vld [vmem:[#allocation2 + $0x298] sm:$0xff]
    %v116 = vld [vmem:[#allocation2 + $0x2a0] sm:$0xff]
    %v117 = vld [vmem:[#allocation2 + $0x2a8] sm:$0xff]
    %v118 = vld [vmem:[#allocation2 + $0x2b0] sm:$0xff]
    %v119 = vld [vmem:[#allocation2 + $0x2b8] sm:$0xff]
    %v120 = vld [vmem:[#allocation2 + $0x2c0] sm:$0xff]
    %v121 = vld [vmem:[#allocation2 + $0x2c8] sm:$0xff]
    %v122 = vld [vmem:[#allocation2 + $0x2d0] sm:$0xff]
    %v123 = vld [vmem:[#allocation2 + $0x2d8] sm:$0xff]
    %v124 = vld [vmem:[#allocation2 + $0x2e0] sm:$0xff]
    %v125 = vld [vmem:[#allocation2 + $0x2e8] sm:$0xff]
    %v126 = vld [vmem:[#allocation2 + $0x2f0] sm:$0xff]
    %v127 = vld [vmem:[#allocation2 + $0x2f8] sm:$0xff]
    %v128 = vld [vmem:[#allocation2 + $0x300] sm:$0xff]
    %v129 = vld [vmem:[#allocation2 + $0x308] sm:$0xff]
    %v130 = vld [vmem:[#allocation2 + $0x310] sm:$0xff]
    %v131 = vld [vmem:[#allocation2 + $0x318] sm:$0xff]
    %v132 = vld [vmem:[#allocation2 + $0x320] sm:$0xff]
    %v133 = vld [vmem:[#allocation2 + $0x328] sm:$0xff]
    %v134 = vld [vmem:[#allocation2 + $0x330] sm:$0xff]
    %v135 = vld [vmem:[#allocation2 + $0x338] sm:$0xff]
    %v136 = vld [vmem:[#allocation2 + $0x340] sm:$0xff]
    %v137 = vld [vmem:[#allocation2 + $0x348] sm:$0xff]
    %v138 = vld [vmem:[#allocation2 + $0x350] sm:$0xff]
    %v139 = vld [vmem:[#allocation2 + $0x358] sm:$0xff]
    %v140 = vld [vmem:[#allocation2 + $0x360] sm:$0xff]
    %v141 = vld [vmem:[#allocation2 + $0x368] sm:$0xff]
    %v142 = vld [vmem:[#allocation2 + $0x370] sm:$0xff]
    %v143 = vld [vmem:[#allocation2 + $0x378] sm:$0xff]
    %v144 = vld [vmem:[#allocation2 + $0x380] sm:$0xff]
    %v145 = vld [vmem:[#allocation2 + $0x388] sm:$0xff]
    %v146 = vld [vmem:[#allocation2 + $0x390] sm:$0xff]
    %v147 = vld [vmem:[#allocation2 + $0x398] sm:$0xff]
    %v148 = vld [vmem:[#allocation2 + $0x3a0] sm:$0xff]
    %v149 = vld [vmem:[#allocation2 + $0x3a8] sm:$0xff]
    %v150 = vld [vmem:[#allocation2 + $0x3b0] sm:$0xff]
    %v151 = vld [vmem:[#allocation2 + $0x3b8] sm:$0xff]
    %v152 = vld [vmem:[#allocation2 + $0x3c0] sm:$0xff]
    %v153 = vld [vmem:[#allocation2 + $0x3c8] sm:$0xff]
    %v154 = vld [vmem:[#allocation2 + $0x3d0] sm:$0xff]
    %v155 = vld [vmem:[#allocation2 + $0x3d8] sm:$0xff]
    %v156 = vld [vmem:[#allocation2 + $0x3e0] sm:$0xff]
    %v157 = vld [vmem:[#allocation2 + $0x3e8] sm:$0xff]
    %v158 = vld [vmem:[#allocation2 + $0x3f0] sm:$0xff]
    %v159 = vld [vmem:[#allocation2 + $0x3f8] sm:$0xff]
    %v160 = vld [vmem:[#allocation2 + $0x400] sm:$0x1f]
    %v161 = vld [vmem:[#allocation2 + $0x408] sm:$0x1f]
    %v162 = vld [vmem:[#allocation2 + $0x410] sm:$0x1f]
    %v163 = vld [vmem:[#allocation2 + $0x418] sm:$0x1f]
    %v164 = vld [vmem:[#allocation2 + $0x420] sm:$0x1f]
    %v165 = vld [vmem:[#allocation2 + $0x428] sm:$0x1f]
    %v166 = vld [vmem:[#allocation2 + $0x430] sm:$0x1f]
    %v167 = vld [vmem:[#allocation2 + $0x438] sm:$0x1f]
    %v168 = vld [vmem:[#allocation2 + $0x440] sm:$0x1f]
    %v169 = vld [vmem:[#allocation2 + $0x448] sm:$0x1f]
    %v170 = vld [vmem:[#allocation2 + $0x450] sm:$0x1f]
    %v171 = vld [vmem:[#allocation2 + $0x458] sm:$0x1f]
    %v172 = vld [vmem:[#allocation2 + $0x460] sm:$0x1f]
    %v173 = vld [vmem:[#allocation2 + $0x468] sm:$0x1f]
    %v174 = vld [vmem:[#allocation2 + $0x470] sm:$0x1f]
    %v175 = vld [vmem:[#allocation2 + $0x478] sm:$0x1f]
    %v176 = vld [vmem:[#allocation2 + $0x480] sm:$0x1f]
    %v177 = vld [vmem:[#allocation2 + $0x488] sm:$0x1f]
    %v178 = vld [vmem:[#allocation2 + $0x490] sm:$0x1f]
    %v179 = vld [vmem:[#allocation2 + $0x498] sm:$0x1f]
    %v180 = vld [vmem:[#allocation2 + $0x4a0] sm:$0x1f]
    %v181 = vld [vmem:[#allocation2 + $0x4a8] sm:$0x1f]
    %v182 = vld [vmem:[#allocation2 + $0x4b0] sm:$0x1f]
    %v183 = vld [vmem:[#allocation2 + $0x4b8] sm:$0x1f]
    %v184 = vld [vmem:[#allocation2 + $0x4c0] sm:$0x1f]
    %v185 = vld [vmem:[#allocation2 + $0x4c8] sm:$0x1f]
    %v186 = vld [vmem:[#allocation2 + $0x4d0] sm:$0x1f]
    %v187 = vld [vmem:[#allocation2 + $0x4d8] sm:$0x1f]
    %v188 = vld [vmem:[#allocation2 + $0x4e0] sm:$0x1f]
    %v189 = vld [vmem:[#allocation2 + $0x4e8] sm:$0x1f]
    %v190 = vld [vmem:[#allocation2 + $0x4f0] sm:$0x1f]
    %v191 = vld [vmem:[#allocation2 + $0x4f8] sm:$0x1f]
    %vm192 = vcmask 302080
    %v194 = vsel %vm192, %v26, 0
    %v197 = vsel %vm192, %v27, 0
    %v200 = vsel %vm192, %v28, 0
    %v203 = vsel %vm192, %v29, 0
    %v206 = vsel %vm192, %v30, 0
    %v209 = vsel %vm192, %v31, 0
    %vm211 = vcmask 1044480
    %v213 = vsel %vm211, %v160, 0
    %v216 = vsel %vm211, %v161, 0
    %v219 = vsel %vm211, %v162, 0
    %v222 = vsel %vm211, %v163, 0
    %v225 = vsel %vm211, %v164, 0
    %v228 = vsel %vm211, %v165, 0
    %v231 = vsel %vm211, %v166, 0
    %v234 = vsel %vm211, %v167, 0
    %v237 = vsel %vm211, %v168, 0
    %v240 = vsel %vm211, %v169, 0
    %v243 = vsel %vm211, %v170, 0
    %v246 = vsel %vm211, %v171, 0
    %v249 = vsel %vm211, %v172, 0
    %v252 = vsel %vm211, %v173, 0
    %v255 = vsel %vm211, %v174, 0
    %v258 = vsel %vm211, %v175, 0
    %v261 = vsel %vm211, %v176, 0
    %v264 = vsel %vm211, %v177, 0
    %v267 = vsel %vm211, %v178, 0
    %v270 = vsel %vm211, %v179, 0
    %v273 = vsel %vm211, %v180, 0
    %v276 = vsel %vm211, %v181, 0
    %v279 = vsel %vm211, %v182, 0
    %v282 = vsel %vm211, %v183, 0
    %v285 = vsel %vm211, %v184, 0
    %v288 = vsel %vm211, %v185, 0
    %v291 = vsel %vm211, %v186, 0
    %v294 = vsel %vm211, %v187, 0
    %v297 = vsel %vm211, %v188, 0
    %v300 = vsel %vm211, %v189, 0
    %v303 = vsel %vm211, %v190, 0
    %v306 = vsel %vm211, %v191, 0
    %308 = vmatprep.subr.mxu0 0.0
    %309 = vmatpush1.msra.mxu0 0.0
    %310 = vmatprep.subr.mxu0 0.0
    %311 = vmatpush1.msra.mxu0 0.0
    %312 = vmatprep.subr.mxu0 0.0
    %313 = vmatpush1.msra.mxu0 0.0
    %314 = vmatprep.subr.mxu0 0.0
    %315 = vmatpush1.msra.mxu0 0.0
    %316 = vmatprep.subr.mxu0 0.0
    %317 = vmatpush1.msra.mxu0 0.0
    %318 = vmatprep.subr.mxu0 0.0
    %319 = vmatpush1.msra.mxu0 0.0
    %320 = vmatprep.subr.mxu0 0.0
    %321 = vmatpush1.msra.mxu0 0.0
    %322 = vmatprep.subr.mxu0 0.0
    %323 = vmatpush1.msra.mxu0 0.0
    %324 = vmatprep.subr.mxu0 0.0
    %325 = vmatpush1.msra.mxu0 0.0
    %326 = vmatprep.subr.mxu0 0.0
    %327 = vmatpush1.msra.mxu0 0.0
    %328 = vmatprep.subr.mxu0 0.0
    %329 = vmatpush1.msra.mxu0 0.0
    %330 = vmatprep.subr.mxu0 %v216
    %331 = vmatpush1.msra.mxu0 %v213
    %332 = vmatprep.subr.mxu0 %v129
    %333 = vmatpush1.msra.mxu0 %v128
    %334 = vmatprep.subr.mxu0 %v97
    %335 = vmatpush1.msra.mxu0 %v96
    %336 = vmatprep.subr.mxu0 %v65
    %337 = vmatpush1.msra.mxu0 %v64
    %338 = vmatprep.subr.mxu0 %v33
    %339 = vmatpush1.msra.mxu0 %v32
    %340 = vmatprep.subr.mxu0 0.0
    %341 = vmatpush2.msra.mxu0 0.0
    %342 = vmatprep.subr.mxu0 0.0
    %343 = vmatpush2.msra.mxu0 0.0
    %344 = vmatprep.subr.mxu0 0.0
    %345 = vmatpush2.msra.mxu0 0.0
    %346 = vmatprep.subr.mxu0 0.0
    %347 = vmatpush2.msra.mxu0 0.0
    %348 = vmatprep.subr.mxu0 0.0
    %349 = vmatpush2.msra.mxu0 0.0
    %350 = vmatprep.subr.mxu0 0.0
    %351 = vmatpush2.msra.mxu0 0.0
    %352 = vmatprep.subr.mxu0 0.0
    %353 = vmatpush2.msra.mxu0 0.0
    %354 = vmatprep.subr.mxu0 0.0
    %355 = vmatpush2.msra.mxu0 0.0
    %356 = vmatprep.subr.mxu0 0.0
    %357 = vmatpush2.msra.mxu0 0.0
    %358 = vmatprep.subr.mxu0 0.0
    %359 = vmatpush2.msra.mxu0 0.0
    %360 = vmatprep.subr.mxu0 0.0
    %361 = vmatpush2.msra.mxu0 0.0
    %362 = vmatprep.subr.mxu0 0.0
    %363 = vmatpush2.msra.mxu0 0.0
    %364 = vmatprep.subr.mxu0 0.0
    %365 = vmatpush2.msra.mxu0 0.0
    %366 = vmatprep.subr.mxu0 0.0
    %367 = vmatpush2.msra.mxu0 0.0
    %368 = vmatprep.subr.mxu0 0.0
    %369 = vmatpush2.msra.mxu0 0.0
    %370 = vmatprep.subr.mxu0 0.0
    %371 = vmatpush2.msra.mxu0 0.0
    %372 = vmatprep.mubr.f32.mxu0 0.0
    %373 = vmatmul.mubr.f32.gmra.mxu0 %v194
    %v374 = vpop.f32.mrf.mxu0
    %v375 = vadd.f32 0.0, %v374
    %v376 = vpop.f32.mrf.mxu0
    %v377 = vadd.f32 0.0, %v376
    %378 = vmatprep.mubr.f32.mxu0 0.0
    %379 = vmatmul.mubr.f32.gmra.mxu0 %v197
    %v380 = vpop.f32.mrf.mxu0
    %v381 = vadd.f32 0.0, %v380
    %v382 = vpop.f32.mrf.mxu0
    %v383 = vadd.f32 0.0, %v382
    %384 = vmatprep.mubr.f32.mxu0 0.0
    %385 = vmatmul.mubr.f32.gmra.mxu0 %v200
    %v386 = vpop.f32.mrf.mxu0
    %v387 = vadd.f32 0.0, %v386
    %v388 = vpop.f32.mrf.mxu0
    %v389 = vadd.f32 0.0, %v388
    %390 = vmatprep.mubr.f32.mxu0 0.0
    %391 = vmatmul.mubr.f32.gmra.mxu0 %v203
    %v392 = vpop.f32.mrf.mxu0
    %v393 = vadd.f32 0.0, %v392
    %v394 = vpop.f32.mrf.mxu0
    %v395 = vadd.f32 0.0, %v394
    %396 = vmatprep.mubr.f32.mxu0 0.0
    %397 = vmatmul.mubr.f32.gmra.mxu0 %v206
    %v398 = vpop.f32.mrf.mxu0
    %v399 = vadd.f32 0.0, %v398
    %v400 = vpop.f32.mrf.mxu0
    %v401 = vadd.f32 0.0, %v400
    %402 = vmatprep.mubr.f32.mxu0 0.0
    %403 = vmatmul.mubr.f32.gmra.mxu0 %v209
    %v404 = vpop.f32.mrf.mxu0
    %v405 = vadd.f32 0.0, %v404
    %v406 = vpop.f32.mrf.mxu0
    %v407 = vadd.f32 0.0, %v406
    %408 = vdwg.mxu0
    %409 = vmatprep.subr.mxu0 0.0
    %410 = vmatpush1.msra.mxu0 0.0
    %411 = vmatprep.subr.mxu0 0.0
    %412 = vmatpush1.msra.mxu0 0.0
    %413 = vmatprep.subr.mxu0 0.0
    %414 = vmatpush1.msra.mxu0 0.0
    %415 = vmatprep.subr.mxu0 0.0
    %416 = vmatpush1.msra.mxu0 0.0
    %417 = vmatprep.subr.mxu0 0.0
    %418 = vmatpush1.msra.mxu0 0.0
    %419 = vmatprep.subr.mxu0 0.0
    %420 = vmatpush1.msra.mxu0 0.0
    %421 = vmatprep.subr.mxu0 0.0
    %422 = vmatpush1.msra.mxu0 0.0
    %423 = vmatprep.subr.mxu0 0.0
    %424 = vmatpush1.msra.mxu0 0.0
    %425 = vmatprep.subr.mxu0 0.0
    %426 = vmatpush1.msra.mxu0 0.0
    %427 = vmatprep.subr.mxu0 0.0
    %428 = vmatpush1.msra.mxu0 0.0
    %429 = vmatprep.subr.mxu0 0.0
    %430 = vmatpush1.msra.mxu0 0.0
    %431 = vmatprep.subr.mxu0 %v222
    %432 = vmatpush1.msra.mxu0 %v219
    %433 = vmatprep.subr.mxu0 %v131
    %434 = vmatpush1.msra.mxu0 %v130
    %435 = vmatprep.subr.mxu0 %v99
    %436 = vmatpush1.msra.mxu0 %v98
    %437 = vmatprep.subr.mxu0 %v67
    %438 = vmatpush1.msra.mxu0 %v66
    %439 = vmatprep.subr.mxu0 %v35
    %440 = vmatpush1.msra.mxu0 %v34
    %441 = vmatprep.subr.mxu0 0.0
    %442 = vmatpush2.msra.mxu0 0.0
    %443 = vmatprep.subr.mxu0 0.0
    %444 = vmatpush2.msra.mxu0 0.0
    %445 = vmatprep.subr.mxu0 0.0
    %446 = vmatpush2.msra.mxu0 0.0
    %447 = vmatprep.subr.mxu0 0.0
    %448 = vmatpush2.msra.mxu0 0.0
    %449 = vmatprep.subr.mxu0 0.0
    %450 = vmatpush2.msra.mxu0 0.0
    %451 = vmatprep.subr.mxu0 0.0
    %452 = vmatpush2.msra.mxu0 0.0
    %453 = vmatprep.subr.mxu0 0.0
    %454 = vmatpush2.msra.mxu0 0.0
    %455 = vmatprep.subr.mxu0 0.0
    %456 = vmatpush2.msra.mxu0 0.0
    %457 = vmatprep.subr.mxu0 0.0
    %458 = vmatpush2.msra.mxu0 0.0
    %459 = vmatprep.subr.mxu0 0.0
    %460 = vmatpush2.msra.mxu0 0.0
    %461 = vmatprep.subr.mxu0 0.0
    %462 = vmatpush2.msra.mxu0 0.0
    %463 = vmatprep.subr.mxu0 0.0
    %464 = vmatpush2.msra.mxu0 0.0
    %465 = vmatprep.subr.mxu0 0.0
    %466 = vmatpush2.msra.mxu0 0.0
    %467 = vmatprep.subr.mxu0 0.0
    %468 = vmatpush2.msra.mxu0 0.0
    %469 = vmatprep.subr.mxu0 0.0
    %470 = vmatpush2.msra.mxu0 0.0
    %471 = vmatprep.subr.mxu0 0.0
    %472 = vmatpush2.msra.mxu0 0.0
    %473 = vmatprep.mubr.f32.mxu0 0.0
    %474 = vmatmul.mubr.f32.gmra.mxu0 %v194
    %v475 = vpop.f32.mrf.mxu0
    %v476 = vadd.f32 0.0, %v475
    %v477 = vpop.f32.mrf.mxu0
    %v478 = vadd.f32 0.0, %v477
    %479 = vmatprep.mubr.f32.mxu0 0.0
    %480 = vmatmul.mubr.f32.gmra.mxu0 %v197
    %v481 = vpop.f32.mrf.mxu0
    %v482 = vadd.f32 0.0, %v481
    %v483 = vpop.f32.mrf.mxu0
    %v484 = vadd.f32 0.0, %v483
    %485 = vmatprep.mubr.f32.mxu0 0.0
    %486 = vmatmul.mubr.f32.gmra.mxu0 %v200
    %v487 = vpop.f32.mrf.mxu0
    %v488 = vadd.f32 0.0, %v487
    %v489 = vpop.f32.mrf.mxu0
    %v490 = vadd.f32 0.0, %v489
    %491 = vmatprep.mubr.f32.mxu0 0.0
    %492 = vmatmul.mubr.f32.gmra.mxu0 %v203
    %v493 = vpop.f32.mrf.mxu0
    %v494 = vadd.f32 0.0, %v493
    %v495 = vpop.f32.mrf.mxu0
    %v496 = vadd.f32 0.0, %v495
    %497 = vmatprep.mubr.f32.mxu0 0.0
    %498 = vmatmul.mubr.f32.gmra.mxu0 %v206
    %v499 = vpop.f32.mrf.mxu0
    %v500 = vadd.f32 0.0, %v499
    %v501 = vpop.f32.mrf.mxu0
    %v502 = vadd.f32 0.0, %v501
    %503 = vmatprep.mubr.f32.mxu0 0.0
    %504 = vmatmul.mubr.f32.gmra.mxu0 %v209
    %v505 = vpop.f32.mrf.mxu0
    %v506 = vadd.f32 0.0, %v505
    %v507 = vpop.f32.mrf.mxu0
    %v508 = vadd.f32 0.0, %v507
    %509 = vdwg.mxu0
    %510 = vmatprep.subr.mxu0 0.0
    %511 = vmatpush1.msra.mxu0 0.0
    %512 = vmatprep.subr.mxu0 0.0
    %513 = vmatpush1.msra.mxu0 0.0
    %514 = vmatprep.subr.mxu0 0.0
    %515 = vmatpush1.msra.mxu0 0.0
    %516 = vmatprep.subr.mxu0 0.0
    %517 = vmatpush1.msra.mxu0 0.0
    %518 = vmatprep.subr.mxu0 0.0
    %519 = vmatpush1.msra.mxu0 0.0
    %520 = vmatprep.subr.mxu0 0.0
    %521 = vmatpush1.msra.mxu0 0.0
    %522 = vmatprep.subr.mxu0 0.0
    %523 = vmatpush1.msra.mxu0 0.0
    %524 = vmatprep.subr.mxu0 0.0
    %525 = vmatpush1.msra.mxu0 0.0
    %526 = vmatprep.subr.mxu0 0.0
    %527 = vmatpush1.msra.mxu0 0.0
    %528 = vmatprep.subr.mxu0 0.0
    %529 = vmatpush1.msra.mxu0 0.0
    %530 = vmatprep.subr.mxu0 0.0
    %531 = vmatpush1.msra.mxu0 0.0
    %532 = vmatprep.subr.mxu0 %v228
    %533 = vmatpush1.msra.mxu0 %v225
    %534 = vmatprep.subr.mxu0 %v133
    %535 = vmatpush1.msra.mxu0 %v132
    %536 = vmatprep.subr.mxu0 %v101
    %537 = vmatpush1.msra.mxu0 %v100
    %538 = vmatprep.subr.mxu0 %v69
    %539 = vmatpush1.msra.mxu0 %v68
    %540 = vmatprep.subr.mxu0 %v37
    %541 = vmatpush1.msra.mxu0 %v36
    %542 = vmatprep.subr.mxu0 0.0
    %543 = vmatpush2.msra.mxu0 0.0
    %544 = vmatprep.subr.mxu0 0.0
    %545 = vmatpush2.msra.mxu0 0.0
    %546 = vmatprep.subr.mxu0 0.0
    %547 = vmatpush2.msra.mxu0 0.0
    %548 = vmatprep.subr.mxu0 0.0
    %549 = vmatpush2.msra.mxu0 0.0
    %550 = vmatprep.subr.mxu0 0.0
    %551 = vmatpush2.msra.mxu0 0.0
    %552 = vmatprep.subr.mxu0 0.0
    %553 = vmatpush2.msra.mxu0 0.0
    %554 = vmatprep.subr.mxu0 0.0
    %555 = vmatpush2.msra.mxu0 0.0
    %556 = vmatprep.subr.mxu0 0.0
    %557 = vmatpush2.msra.mxu0 0.0
    %558 = vmatprep.subr.mxu0 0.0
    %559 = vmatpush2.msra.mxu0 0.0
    %560 = vmatprep.subr.mxu0 0.0
    %561 = vmatpush2.msra.mxu0 0.0
    %562 = vmatprep.subr.mxu0 0.0
    %563 = vmatpush2.msra.mxu0 0.0
    %564 = vmatprep.subr.mxu0 0.0
    %565 = vmatpush2.msra.mxu0 0.0
    %566 = vmatprep.subr.mxu0 0.0
    %567 = vmatpush2.msra.mxu0 0.0
    %568 = vmatprep.subr.mxu0 0.0
    %569 = vmatpush2.msra.mxu0 0.0
    %570 = vmatprep.subr.mxu0 0.0
    %571 = vmatpush2.msra.mxu0 0.0
    %572 = vmatprep.subr.mxu0 0.0
    %573 = vmatpush2.msra.mxu0 0.0
    %574 = vmatprep.mubr.f32.mxu0 0.0
    %575 = vmatmul.mubr.f32.gmra.mxu0 %v194
    %v576 = vpop.f32.mrf.mxu0
    %v577 = vadd.f32 0.0, %v576
    %v578 = vpop.f32.mrf.mxu0
    %v579 = vadd.f32 0.0, %v578
    %580 = vmatprep.mubr.f32.mxu0 0.0
    %581 = vmatmul.mubr.f32.gmra.mxu0 %v197
    %v582 = vpop.f32.mrf.mxu0
    %v583 = vadd.f32 0.0, %v582
    %v584 = vpop.f32.mrf.mxu0
    %v585 = vadd.f32 0.0, %v584
    %586 = vmatprep.mubr.f32.mxu0 0.0
    %587 = vmatmul.mubr.f32.gmra.mxu0 %v200
    %v588 = vpop.f32.mrf.mxu0
    %v589 = vadd.f32 0.0, %v588
    %v590 = vpop.f32.mrf.mxu0
    %v591 = vadd.f32 0.0, %v590
    %592 = vmatprep.mubr.f32.mxu0 0.0
    %593 = vmatmul.mubr.f32.gmra.mxu0 %v203
    %v594 = vpop.f32.mrf.mxu0
    %v595 = vadd.f32 0.0, %v594
    %v596 = vpop.f32.mrf.mxu0
    %v597 = vadd.f32 0.0, %v596
    %598 = vmatprep.mubr.f32.mxu0 0.0
    %599 = vmatmul.mubr.f32.gmra.mxu0 %v206
    %v600 = vpop.f32.mrf.mxu0
    %v601 = vadd.f32 0.0, %v600
    %v602 = vpop.f32.mrf.mxu0
    %v603 = vadd.f32 0.0, %v602
    %604 = vmatprep.mubr.f32.mxu0 0.0
    %605 = vmatmul.mubr.f32.gmra.mxu0 %v209
    %v606 = vpop.f32.mrf.mxu0
    %v607 = vadd.f32 0.0, %v606
    %v608 = vpop.f32.mrf.mxu0
    %v609 = vadd.f32 0.0, %v608
    %610 = vdwg.mxu0
    %611 = vmatprep.subr.mxu0 0.0
    %612 = vmatpush1.msra.mxu0 0.0
    %613 = vmatprep.subr.mxu0 0.0
    %614 = vmatpush1.msra.mxu0 0.0
    %615 = vmatprep.subr.mxu0 0.0
    %616 = vmatpush1.msra.mxu0 0.0
    %617 = vmatprep.subr.mxu0 0.0
    %618 = vmatpush1.msra.mxu0 0.0
    %619 = vmatprep.subr.mxu0 0.0
    %620 = vmatpush1.msra.mxu0 0.0
    %621 = vmatprep.subr.mxu0 0.0
    %622 = vmatpush1.msra.mxu0 0.0
    %623 = vmatprep.subr.mxu0 0.0
    %624 = vmatpush1.msra.mxu0 0.0
    %625 = vmatprep.subr.mxu0 0.0
    %626 = vmatpush1.msra.mxu0 0.0
    %627 = vmatprep.subr.mxu0 0.0
    %628 = vmatpush1.msra.mxu0 0.0
    %629 = vmatprep.subr.mxu0 0.0
    %630 = vmatpush1.msra.mxu0 0.0
    %631 = vmatprep.subr.mxu0 0.0
    %632 = vmatpush1.msra.mxu0 0.0
    %633 = vmatprep.subr.mxu0 %v234
    %634 = vmatpush1.msra.mxu0 %v231
    %635 = vmatprep.subr.mxu0 %v135
    %636 = vmatpush1.msra.mxu0 %v134
    %637 = vmatprep.subr.mxu0 %v103
    %638 = vmatpush1.msra.mxu0 %v102
    %639 = vmatprep.subr.mxu0 %v71
    %640 = vmatpush1.msra.mxu0 %v70
    %641 = vmatprep.subr.mxu0 %v39
    %642 = vmatpush1.msra.mxu0 %v38
    %643 = vmatprep.subr.mxu0 0.0
    %644 = vmatpush2.msra.mxu0 0.0
    %645 = vmatprep.subr.mxu0 0.0
    %646 = vmatpush2.msra.mxu0 0.0
    %647 = vmatprep.subr.mxu0 0.0
    %648 = vmatpush2.msra.mxu0 0.0
    %649 = vmatprep.subr.mxu0 0.0
    %650 = vmatpush2.msra.mxu0 0.0
    %651 = vmatprep.subr.mxu0 0.0
    %652 = vmatpush2.msra.mxu0 0.0
    %653 = vmatprep.subr.mxu0 0.0
    %654 = vmatpush2.msra.mxu0 0.0
    %655 = vmatprep.subr.mxu0 0.0
    %656 = vmatpush2.msra.mxu0 0.0
    %657 = vmatprep.subr.mxu0 0.0
    %658 = vmatpush2.msra.mxu0 0.0
    %659 = vmatprep.subr.mxu0 0.0
    %660 = vmatpush2.msra.mxu0 0.0
    %661 = vmatprep.subr.mxu0 0.0
    %662 = vmatpush2.msra.mxu0 0.0
    %663 = vmatprep.subr.mxu0 0.0
    %664 = vmatpush2.msra.mxu0 0.0
    %665 = vmatprep.subr.mxu0 0.0
    %666 = vmatpush2.msra.mxu0 0.0
    %667 = vmatprep.subr.mxu0 0.0
    %668 = vmatpush2.msra.mxu0 0.0
    %669 = vmatprep.subr.mxu0 0.0
    %670 = vmatpush2.msra.mxu0 0.0
    %671 = vmatprep.subr.mxu0 0.0
    %672 = vmatpush2.msra.mxu0 0.0
    %673 = vmatprep.subr.mxu0 0.0
    %674 = vmatpush2.msra.mxu0 0.0
    %675 = vmatprep.mubr.f32.mxu0 0.0
    %676 = vmatmul.mubr.f32.gmra.mxu0 %v194
    %v677 = vpop.f32.mrf.mxu0
    %v678 = vadd.f32 0.0, %v677
    %v679 = vpop.f32.mrf.mxu0
    %v680 = vadd.f32 0.0, %v679
    %681 = vmatprep.mubr.f32.mxu0 0.0
    %682 = vmatmul.mubr.f32.gmra.mxu0 %v197
    %v683 = vpop.f32.mrf.mxu0
    %v684 = vadd.f32 0.0, %v683
    %v685 = vpop.f32.mrf.mxu0
    %v686 = vadd.f32 0.0, %v685
    %687 = vmatprep.mubr.f32.mxu0 0.0
    %688 = vmatmul.mubr.f32.gmra.mxu0 %v200
    %v689 = vpop.f32.mrf.mxu0
    %v690 = vadd.f32 0.0, %v689
    %v691 = vpop.f32.mrf.mxu0
    %v692 = vadd.f32 0.0, %v691
    %693 = vmatprep.mubr.f32.mxu0 0.0
    %694 = vmatmul.mubr.f32.gmra.mxu0 %v203
    %v695 = vpop.f32.mrf.mxu0
    %v696 = vadd.f32 0.0, %v695
    %v697 = vpop.f32.mrf.mxu0
    %v698 = vadd.f32 0.0, %v697
    %699 = vmatprep.mubr.f32.mxu0 0.0
    %700 = vmatmul.mubr.f32.gmra.mxu0 %v206
    %v701 = vpop.f32.mrf.mxu0
    %v702 = vadd.f32 0.0, %v701
    %v703 = vpop.f32.mrf.mxu0
    %v704 = vadd.f32 0.0, %v703
    %705 = vmatprep.mubr.f32.mxu0 0.0
    %706 = vmatmul.mubr.f32.gmra.mxu0 %v209
    %v707 = vpop.f32.mrf.mxu0
    %v708 = vadd.f32 0.0, %v707
    %v709 = vpop.f32.mrf.mxu0
    %v710 = vadd.f32 0.0, %v709
    %711 = vdwg.mxu0
    %712 = vmatprep.subr.mxu0 0.0
    %713 = vmatpush1.msra.mxu0 0.0
    %714 = vmatprep.subr.mxu0 0.0
    %715 = vmatpush1.msra.mxu0 0.0
    %716 = vmatprep.subr.mxu0 0.0
    %717 = vmatpush1.msra.mxu0 0.0
    %718 = vmatprep.subr.mxu0 0.0
    %719 = vmatpush1.msra.mxu0 0.0
    %720 = vmatprep.subr.mxu0 0.0
    %721 = vmatpush1.msra.mxu0 0.0
    %722 = vmatprep.subr.mxu0 0.0
    %723 = vmatpush1.msra.mxu0 0.0
    %724 = vmatprep.subr.mxu0 0.0
    %725 = vmatpush1.msra.mxu0 0.0
    %726 = vmatprep.subr.mxu0 0.0
    %727 = vmatpush1.msra.mxu0 0.0
    %728 = vmatprep.subr.mxu0 0.0
    %729 = vmatpush1.msra.mxu0 0.0
    %730 = vmatprep.subr.mxu0 0.0
    %731 = vmatpush1.msra.mxu0 0.0
    %732 = vmatprep.subr.mxu0 0.0
    %733 = vmatpush1.msra.mxu0 0.0
    %734 = vmatprep.subr.mxu0 %v240
    %735 = vmatpush1.msra.mxu0 %v237
    %736 = vmatprep.subr.mxu0 %v137
    %737 = vmatpush1.msra.mxu0 %v136
    %738 = vmatprep.subr.mxu0 %v105
    %739 = vmatpush1.msra.mxu0 %v104
    %740 = vmatprep.subr.mxu0 %v73
    %741 = vmatpush1.msra.mxu0 %v72
    %742 = vmatprep.subr.mxu0 %v41
    %743 = vmatpush1.msra.mxu0 %v40
    %744 = vmatprep.subr.mxu0 0.0
    %745 = vmatpush2.msra.mxu0 0.0
    %746 = vmatprep.subr.mxu0 0.0
    %747 = vmatpush2.msra.mxu0 0.0
    %748 = vmatprep.subr.mxu0 0.0
    %749 = vmatpush2.msra.mxu0 0.0
    %750 = vmatprep.subr.mxu0 0.0
    %751 = vmatpush2.msra.mxu0 0.0
    %752 = vmatprep.subr.mxu0 0.0
    %753 = vmatpush2.msra.mxu0 0.0
    %754 = vmatprep.subr.mxu0 0.0
    %755 = vmatpush2.msra.mxu0 0.0
    %756 = vmatprep.subr.mxu0 0.0
    %757 = vmatpush2.msra.mxu0 0.0
    %758 = vmatprep.subr.mxu0 0.0
    %759 = vmatpush2.msra.mxu0 0.0
    %760 = vmatprep.subr.mxu0 0.0
    %761 = vmatpush2.msra.mxu0 0.0
    %762 = vmatprep.subr.mxu0 0.0
    %763 = vmatpush2.msra.mxu0 0.0
    %764 = vmatprep.subr.mxu0 0.0
    %765 = vmatpush2.msra.mxu0 0.0
    %766 = vmatprep.subr.mxu0 0.0
    %767 = vmatpush2.msra.mxu0 0.0
    %768 = vmatprep.subr.mxu0 0.0
    %769 = vmatpush2.msra.mxu0 0.0
    %770 = vmatprep.subr.mxu0 0.0
    %771 = vmatpush2.msra.mxu0 0.0
    %772 = vmatprep.subr.mxu0 0.0
    %773 = vmatpush2.msra.mxu0 0.0
    %774 = vmatprep.subr.mxu0 0.0
    %775 = vmatpush2.msra.mxu0 0.0
    %776 = vmatprep.mubr.f32.mxu0 0.0
    %777 = vmatmul.mubr.f32.gmra.mxu0 %v194
    %v778 = vpop.f32.mrf.mxu0
    %v779 = vadd.f32 0.0, %v778
    %v780 = vpop.f32.mrf.mxu0
    %v781 = vadd.f32 0.0, %v780
    %782 = vmatprep.mubr.f32.mxu0 0.0
    %783 = vmatmul.mubr.f32.gmra.mxu0 %v197
    %v784 = vpop.f32.mrf.mxu0
    %v785 = vadd.f32 0.0, %v784
    %v786 = vpop.f32.mrf.mxu0
    %v787 = vadd.f32 0.0, %v786
    %788 = vmatprep.mubr.f32.mxu0 0.0
    %789 = vmatmul.mubr.f32.gmra.mxu0 %v200
    %v790 = vpop.f32.mrf.mxu0
    %v791 = vadd.f32 0.0, %v790
    %v792 = vpop.f32.mrf.mxu0
    %v793 = vadd.f32 0.0, %v792
    %794 = vmatprep.mubr.f32.mxu0 0.0
    %795 = vmatmul.mubr.f32.gmra.mxu0 %v203
    %v796 = vpop.f32.mrf.mxu0
    %v797 = vadd.f32 0.0, %v796
    %v798 = vpop.f32.mrf.mxu0
    %v799 = vadd.f32 0.0, %v798
    %800 = vmatprep.mubr.f32.mxu0 0.0
    %801 = vmatmul.mubr.f32.gmra.mxu0 %v206
    %v802 = vpop.f32.mrf.mxu0
    %v803 = vadd.f32 0.0, %v802
    %v804 = vpop.f32.mrf.mxu0
    %v805 = vadd.f32 0.0, %v804
    %806 = vmatprep.mubr.f32.mxu0 0.0
    %807 = vmatmul.mubr.f32.gmra.mxu0 %v209
    %v808 = vpop.f32.mrf.mxu0
    %v809 = vadd.f32 0.0, %v808
    %v810 = vpop.f32.mrf.mxu0
    %v811 = vadd.f32 0.0, %v810
    %812 = vdwg.mxu0
    %813 = vmatprep.subr.mxu0 0.0
    %814 = vmatpush1.msra.mxu0 0.0
    %815 = vmatprep.subr.mxu0 0.0
    %816 = vmatpush1.msra.mxu0 0.0
    %817 = vmatprep.subr.mxu0 0.0
    %818 = vmatpush1.msra.mxu0 0.0
    %819 = vmatprep.subr.mxu0 0.0
    %820 = vmatpush1.msra.mxu0 0.0
    %821 = vmatprep.subr.mxu0 0.0
    %822 = vmatpush1.msra.mxu0 0.0
    %823 = vmatprep.subr.mxu0 0.0
    %824 = vmatpush1.msra.mxu0 0.0
    %825 = vmatprep.subr.mxu0 0.0
    %826 = vmatpush1.msra.mxu0 0.0
    %827 = vmatprep.subr.mxu0 0.0
    %828 = vmatpush1.msra.mxu0 0.0
    %829 = vmatprep.subr.mxu0 0.0
    %830 = vmatpush1.msra.mxu0 0.0
    %831 = vmatprep.subr.mxu0 0.0
    %832 = vmatpush1.msra.mxu0 0.0
    %833 = vmatprep.subr.mxu0 0.0
    %834 = vmatpush1.msra.mxu0 0.0
    %835 = vmatprep.subr.mxu0 %v246
    %836 = vmatpush1.msra.mxu0 %v243
    %837 = vmatprep.subr.mxu0 %v139
    %838 = vmatpush1.msra.mxu0 %v138
    %839 = vmatprep.subr.mxu0 %v107
    %840 = vmatpush1.msra.mxu0 %v106
    %841 = vmatprep.subr.mxu0 %v75
    %842 = vmatpush1.msra.mxu0 %v74
    %843 = vmatprep.subr.mxu0 %v43
    %844 = vmatpush1.msra.mxu0 %v42
    %845 = vmatprep.subr.mxu0 0.0
    %846 = vmatpush2.msra.mxu0 0.0
    %847 = vmatprep.subr.mxu0 0.0
    %848 = vmatpush2.msra.mxu0 0.0
    %849 = vmatprep.subr.mxu0 0.0
    %850 = vmatpush2.msra.mxu0 0.0
    %851 = vmatprep.subr.mxu0 0.0
    %852 = vmatpush2.msra.mxu0 0.0
    %853 = vmatprep.subr.mxu0 0.0
    %854 = vmatpush2.msra.mxu0 0.0
    %855 = vmatprep.subr.mxu0 0.0
    %856 = vmatpush2.msra.mxu0 0.0
    %857 = vmatprep.subr.mxu0 0.0
    %858 = vmatpush2.msra.mxu0 0.0
    %859 = vmatprep.subr.mxu0 0.0
    %860 = vmatpush2.msra.mxu0 0.0
    %861 = vmatprep.subr.mxu0 0.0
    %862 = vmatpush2.msra.mxu0 0.0
    %863 = vmatprep.subr.mxu0 0.0
    %864 = vmatpush2.msra.mxu0 0.0
    %865 = vmatprep.subr.mxu0 0.0
    %866 = vmatpush2.msra.mxu0 0.0
    %867 = vmatprep.subr.mxu0 0.0
    %868 = vmatpush2.msra.mxu0 0.0
    %869 = vmatprep.subr.mxu0 0.0
    %870 = vmatpush2.msra.mxu0 0.0
    %871 = vmatprep.subr.mxu0 0.0
    %872 = vmatpush2.msra.mxu0 0.0
    %873 = vmatprep.subr.mxu0 0.0
    %874 = vmatpush2.msra.mxu0 0.0
    %875 = vmatprep.subr.mxu0 0.0
    %876 = vmatpush2.msra.mxu0 0.0
    %877 = vmatprep.mubr.f32.mxu0 0.0
    %878 = vmatmul.mubr.f32.gmra.mxu0 %v194
    %v879 = vpop.f32.mrf.mxu0
    %v880 = vadd.f32 0.0, %v879
    %v881 = vpop.f32.mrf.mxu0
    %v882 = vadd.f32 0.0, %v881
    %883 = vmatprep.mubr.f32.mxu0 0.0
    %884 = vmatmul.mubr.f32.gmra.mxu0 %v197
    %v885 = vpop.f32.mrf.mxu0
    %v886 = vadd.f32 0.0, %v885
    %v887 = vpop.f32.mrf.mxu0
    %v888 = vadd.f32 0.0, %v887
    %889 = vmatprep.mubr.f32.mxu0 0.0
    %890 = vmatmul.mubr.f32.gmra.mxu0 %v200
    %v891 = vpop.f32.mrf.mxu0
    %v892 = vadd.f32 0.0, %v891
    %v893 = vpop.f32.mrf.mxu0
    %v894 = vadd.f32 0.0, %v893
    %895 = vmatprep.mubr.f32.mxu0 0.0
    %896 = vmatmul.mubr.f32.gmra.mxu0 %v203
    %v897 = vpop.f32.mrf.mxu0
    %v898 = vadd.f32 0.0, %v897
    %v899 = vpop.f32.mrf.mxu0
    %v900 = vadd.f32 0.0, %v899
    %901 = vmatprep.mubr.f32.mxu0 0.0
    %902 = vmatmul.mubr.f32.gmra.mxu0 %v206
    %v903 = vpop.f32.mrf.mxu0
    %v904 = vadd.f32 0.0, %v903
    %v905 = vpop.f32.mrf.mxu0
    %v906 = vadd.f32 0.0, %v905
    %907 = vmatprep.mubr.f32.mxu0 0.0
    %908 = vmatmul.mubr.f32.gmra.mxu0 %v209
    %v909 = vpop.f32.mrf.mxu0
    %v910 = vadd.f32 0.0, %v909
    %v911 = vpop.f32.mrf.mxu0
    %v912 = vadd.f32 0.0, %v911
    %913 = vdwg.mxu0
    %914 = vmatprep.subr.mxu0 0.0
    %915 = vmatpush1.msra.mxu0 0.0
    %916 = vmatprep.subr.mxu0 0.0
    %917 = vmatpush1.msra.mxu0 0.0
    %918 = vmatprep.subr.mxu0 0.0
    %919 = vmatpush1.msra.mxu0 0.0
    %920 = vmatprep.subr.mxu0 0.0
    %921 = vmatpush1.msra.mxu0 0.0
    %922 = vmatprep.subr.mxu0 0.0
    %923 = vmatpush1.msra.mxu0 0.0
    %924 = vmatprep.subr.mxu0 0.0
    %925 = vmatpush1.msra.mxu0 0.0
    %926 = vmatprep.subr.mxu0 0.0
    %927 = vmatpush1.msra.mxu0 0.0
    %928 = vmatprep.subr.mxu0 0.0
    %929 = vmatpush1.msra.mxu0 0.0
    %930 = vmatprep.subr.mxu0 0.0
    %931 = vmatpush1.msra.mxu0 0.0
    %932 = vmatprep.subr.mxu0 0.0
    %933 = vmatpush1.msra.mxu0 0.0
    %934 = vmatprep.subr.mxu0 0.0
    %935 = vmatpush1.msra.mxu0 0.0
    %936 = vmatprep.subr.mxu0 %v252
    %937 = vmatpush1.msra.mxu0 %v249
    %938 = vmatprep.subr.mxu0 %v141
    %939 = vmatpush1.msra.mxu0 %v140
    %940 = vmatprep.subr.mxu0 %v109
    %941 = vmatpush1.msra.mxu0 %v108
    %942 = vmatprep.subr.mxu0 %v77
    %943 = vmatpush1.msra.mxu0 %v76
    %944 = vmatprep.subr.mxu0 %v45
    %945 = vmatpush1.msra.mxu0 %v44
    %946 = vmatprep.subr.mxu0 0.0
    %947 = vmatpush2.msra.mxu0 0.0
    %948 = vmatprep.subr.mxu0 0.0
    %949 = vmatpush2.msra.mxu0 0.0
    %950 = vmatprep.subr.mxu0 0.0
    %951 = vmatpush2.msra.mxu0 0.0
    %952 = vmatprep.subr.mxu0 0.0
    %953 = vmatpush2.msra.mxu0 0.0
    %954 = vmatprep.subr.mxu0 0.0
    %955 = vmatpush2.msra.mxu0 0.0
    %956 = vmatprep.subr.mxu0 0.0
    %957 = vmatpush2.msra.mxu0 0.0
    %958 = vmatprep.subr.mxu0 0.0
    %959 = vmatpush2.msra.mxu0 0.0
    %960 = vmatprep.subr.mxu0 0.0
    %961 = vmatpush2.msra.mxu0 0.0
    %962 = vmatprep.subr.mxu0 0.0
    %963 = vmatpush2.msra.mxu0 0.0
    %964 = vmatprep.subr.mxu0 0.0
    %965 = vmatpush2.msra.mxu0 0.0
    %966 = vmatprep.subr.mxu0 0.0
    %967 = vmatpush2.msra.mxu0 0.0
    %968 = vmatprep.subr.mxu0 0.0
    %969 = vmatpush2.msra.mxu0 0.0
    %970 = vmatprep.subr.mxu0 0.0
    %971 = vmatpush2.msra.mxu0 0.0
    %972 = vmatprep.subr.mxu0 0.0
    %973 = vmatpush2.msra.mxu0 0.0
    %974 = vmatprep.subr.mxu0 0.0
    %975 = vmatpush2.msra.mxu0 0.0
    %976 = vmatprep.subr.mxu0 0.0
    %977 = vmatpush2.msra.mxu0 0.0
    %978 = vmatprep.mubr.f32.mxu0 0.0
    %979 = vmatmul.mubr.f32.gmra.mxu0 %v194
    %v980 = vpop.f32.mrf.mxu0
    %v981 = vadd.f32 0.0, %v980
    %v982 = vpop.f32.mrf.mxu0
    %v983 = vadd.f32 0.0, %v982
    %984 = vmatprep.mubr.f32.mxu0 0.0
    %985 = vmatmul.mubr.f32.gmra.mxu0 %v197
    %v986 = vpop.f32.mrf.mxu0
    %v987 = vadd.f32 0.0, %v986
    %v988 = vpop.f32.mrf.mxu0
    %v989 = vadd.f32 0.0, %v988
    %990 = vmatprep.mubr.f32.mxu0 0.0
    %991 = vmatmul.mubr.f32.gmra.mxu0 %v200
    %v992 = vpop.f32.mrf.mxu0
    %v993 = vadd.f32 0.0, %v992
    %v994 = vpop.f32.mrf.mxu0
    %v995 = vadd.f32 0.0, %v994
    %996 = vmatprep.mubr.f32.mxu0 0.0
    %997 = vmatmul.mubr.f32.gmra.mxu0 %v203
    %v998 = vpop.f32.mrf.mxu0
    %v999 = vadd.f32 0.0, %v998
    %v1000 = vpop.f32.mrf.mxu0
    %v1001 = vadd.f32 0.0, %v1000
    %1002 = vmatprep.mubr.f32.mxu0 0.0
    %1003 = vmatmul.mubr.f32.gmra.mxu0 %v206
    %v1004 = vpop.f32.mrf.mxu0
    %v1005 = vadd.f32 0.0, %v1004
    %v1006 = vpop.f32.mrf.mxu0
    %v1007 = vadd.f32 0.0, %v1006
    %1008 = vmatprep.mubr.f32.mxu0 0.0
    %1009 = vmatmul.mubr.f32.gmra.mxu0 %v209
    %v1010 = vpop.f32.mrf.mxu0
    %v1011 = vadd.f32 0.0, %v1010
    %v1012 = vpop.f32.mrf.mxu0
    %v1013 = vadd.f32 0.0, %v1012
    %1014 = vdwg.mxu0
    %1015 = vmatprep.subr.mxu0 0.0
    %1016 = vmatpush1.msra.mxu0 0.0
    %1017 = vmatprep.subr.mxu0 0.0
    %1018 = vmatpush1.msra.mxu0 0.0
    %1019 = vmatprep.subr.mxu0 0.0
    %1020 = vmatpush1.msra.mxu0 0.0
    %1021 = vmatprep.subr.mxu0 0.0
    %1022 = vmatpush1.msra.mxu0 0.0
    %1023 = vmatprep.subr.mxu0 0.0
    %1024 = vmatpush1.msra.mxu0 0.0
    %1025 = vmatprep.subr.mxu0 0.0
    %1026 = vmatpush1.msra.mxu0 0.0
    %1027 = vmatprep.subr.mxu0 0.0
    %1028 = vmatpush1.msra.mxu0 0.0
    %1029 = vmatprep.subr.mxu0 0.0
    %1030 = vmatpush1.msra.mxu0 0.0
    %1031 = vmatprep.subr.mxu0 0.0
    %1032 = vmatpush1.msra.mxu0 0.0
    %1033 = vmatprep.subr.mxu0 0.0
    %1034 = vmatpush1.msra.mxu0 0.0
    %1035 = vmatprep.subr.mxu0 0.0
    %1036 = vmatpush1.msra.mxu0 0.0
    %1037 = vmatprep.subr.mxu0 %v258
    %1038 = vmatpush1.msra.mxu0 %v255
    %1039 = vmatprep.subr.mxu0 %v143
    %1040 = vmatpush1.msra.mxu0 %v142
    %1041 = vmatprep.subr.mxu0 %v111
    %1042 = vmatpush1.msra.mxu0 %v110
    %1043 = vmatprep.subr.mxu0 %v79
    %1044 = vmatpush1.msra.mxu0 %v78
    %1045 = vmatprep.subr.mxu0 %v47
    %1046 = vmatpush1.msra.mxu0 %v46
    %1047 = vmatprep.subr.mxu0 0.0
    %1048 = vmatpush2.msra.mxu0 0.0
    %1049 = vmatprep.subr.mxu0 0.0
    %1050 = vmatpush2.msra.mxu0 0.0
    %1051 = vmatprep.subr.mxu0 0.0
    %1052 = vmatpush2.msra.mxu0 0.0
    %1053 = vmatprep.subr.mxu0 0.0
    %1054 = vmatpush2.msra.mxu0 0.0
    %1055 = vmatprep.subr.mxu0 0.0
    %1056 = vmatpush2.msra.mxu0 0.0
    %1057 = vmatprep.subr.mxu0 0.0
    %1058 = vmatpush2.msra.mxu0 0.0
    %1059 = vmatprep.subr.mxu0 0.0
    %1060 = vmatpush2.msra.mxu0 0.0
    %1061 = vmatprep.subr.mxu0 0.0
    %1062 = vmatpush2.msra.mxu0 0.0
    %1063 = vmatprep.subr.mxu0 0.0
    %1064 = vmatpush2.msra.mxu0 0.0
    %1065 = vmatprep.subr.mxu0 0.0
    %1066 = vmatpush2.msra.mxu0 0.0
    %1067 = vmatprep.subr.mxu0 0.0
    %1068 = vmatpush2.msra.mxu0 0.0
    %1069 = vmatprep.subr.mxu0 0.0
    %1070 = vmatpush2.msra.mxu0 0.0
    %1071 = vmatprep.subr.mxu0 0.0
    %1072 = vmatpush2.msra.mxu0 0.0
    %1073 = vmatprep.subr.mxu0 0.0
    %1074 = vmatpush2.msra.mxu0 0.0
    %1075 = vmatprep.subr.mxu0 0.0
    %1076 = vmatpush2.msra.mxu0 0.0
    %1077 = vmatprep.subr.mxu0 0.0
    %1078 = vmatpush2.msra.mxu0 0.0
    %1079 = vmatprep.mubr.f32.mxu0 0.0
    %1080 = vmatmul.mubr.f32.gmra.mxu0 %v194
    %v1081 = vpop.f32.mrf.mxu0
    %v1082 = vadd.f32 0.0, %v1081
    %v1083 = vpop.f32.mrf.mxu0
    %v1084 = vadd.f32 0.0, %v1083
    %1085 = vmatprep.mubr.f32.mxu0 0.0
    %1086 = vmatmul.mubr.f32.gmra.mxu0 %v197
    %v1087 = vpop.f32.mrf.mxu0
    %v1088 = vadd.f32 0.0, %v1087
    %v1089 = vpop.f32.mrf.mxu0
    %v1090 = vadd.f32 0.0, %v1089
    %1091 = vmatprep.mubr.f32.mxu0 0.0
    %1092 = vmatmul.mubr.f32.gmra.mxu0 %v200
    %v1093 = vpop.f32.mrf.mxu0
    %v1094 = vadd.f32 0.0, %v1093
    %v1095 = vpop.f32.mrf.mxu0
    %v1096 = vadd.f32 0.0, %v1095
    %1097 = vmatprep.mubr.f32.mxu0 0.0
    %1098 = vmatmul.mubr.f32.gmra.mxu0 %v203
    %v1099 = vpop.f32.mrf.mxu0
    %v1100 = vadd.f32 0.0, %v1099
    %v1101 = vpop.f32.mrf.mxu0
    %v1102 = vadd.f32 0.0, %v1101
    %1103 = vmatprep.mubr.f32.mxu0 0.0
    %1104 = vmatmul.mubr.f32.gmra.mxu0 %v206
    %v1105 = vpop.f32.mrf.mxu0
    %v1106 = vadd.f32 0.0, %v1105
    %v1107 = vpop.f32.mrf.mxu0
    %v1108 = vadd.f32 0.0, %v1107
    %1109 = vmatprep.mubr.f32.mxu0 0.0
    %1110 = vmatmul.mubr.f32.gmra.mxu0 %v209
    %v1111 = vpop.f32.mrf.mxu0
    %v1112 = vadd.f32 0.0, %v1111
    %v1113 = vpop.f32.mrf.mxu0
    %v1114 = vadd.f32 0.0, %v1113
    %1115 = vdwg.mxu0
    %1116 = vmatprep.subr.mxu0 0.0
    %1117 = vmatpush1.msra.mxu0 0.0
    %1118 = vmatprep.subr.mxu0 0.0
    %1119 = vmatpush1.msra.mxu0 0.0
    %1120 = vmatprep.subr.mxu0 0.0
    %1121 = vmatpush1.msra.mxu0 0.0
    %1122 = vmatprep.subr.mxu0 0.0
    %1123 = vmatpush1.msra.mxu0 0.0
    %1124 = vmatprep.subr.mxu0 0.0
    %1125 = vmatpush1.msra.mxu0 0.0
    %1126 = vmatprep.subr.mxu0 0.0
    %1127 = vmatpush1.msra.mxu0 0.0
    %1128 = vmatprep.subr.mxu0 0.0
    %1129 = vmatpush1.msra.mxu0 0.0
    %1130 = vmatprep.subr.mxu0 0.0
    %1131 = vmatpush1.msra.mxu0 0.0
    %1132 = vmatprep.subr.mxu0 0.0
    %1133 = vmatpush1.msra.mxu0 0.0
    %1134 = vmatprep.subr.mxu0 0.0
    %1135 = vmatpush1.msra.mxu0 0.0
    %1136 = vmatprep.subr.mxu0 0.0
    %1137 = vmatpush1.msra.mxu0 0.0
    %1138 = vmatprep.subr.mxu0 %v264
    %1139 = vmatpush1.msra.mxu0 %v261
    %1140 = vmatprep.subr.mxu0 %v145
    %1141 = vmatpush1.msra.mxu0 %v144
    %1142 = vmatprep.subr.mxu0 %v113
    %1143 = vmatpush1.msra.mxu0 %v112
    %1144 = vmatprep.subr.mxu0 %v81
    %1145 = vmatpush1.msra.mxu0 %v80
    %1146 = vmatprep.subr.mxu0 %v49
    %1147 = vmatpush1.msra.mxu0 %v48
    %1148 = vmatprep.subr.mxu0 0.0
    %1149 = vmatpush2.msra.mxu0 0.0
    %1150 = vmatprep.subr.mxu0 0.0
    %1151 = vmatpush2.msra.mxu0 0.0
    %1152 = vmatprep.subr.mxu0 0.0
    %1153 = vmatpush2.msra.mxu0 0.0
    %1154 = vmatprep.subr.mxu0 0.0
    %1155 = vmatpush2.msra.mxu0 0.0
    %1156 = vmatprep.subr.mxu0 0.0
    %1157 = vmatpush2.msra.mxu0 0.0
    %1158 = vmatprep.subr.mxu0 0.0
    %1159 = vmatpush2.msra.mxu0 0.0
    %1160 = vmatprep.subr.mxu0 0.0
    %1161 = vmatpush2.msra.mxu0 0.0
    %1162 = vmatprep.subr.mxu0 0.0
    %1163 = vmatpush2.msra.mxu0 0.0
    %1164 = vmatprep.subr.mxu0 0.0
    %1165 = vmatpush2.msra.mxu0 0.0
    %1166 = vmatprep.subr.mxu0 0.0
    %1167 = vmatpush2.msra.mxu0 0.0
    %1168 = vmatprep.subr.mxu0 0.0
    %1169 = vmatpush2.msra.mxu0 0.0
    %1170 = vmatprep.subr.mxu0 0.0
    %1171 = vmatpush2.msra.mxu0 0.0
    %1172 = vmatprep.subr.mxu0 0.0
    %1173 = vmatpush2.msra.mxu0 0.0
    %1174 = vmatprep.subr.mxu0 0.0
    %1175 = vmatpush2.msra.mxu0 0.0
    %1176 = vmatprep.subr.mxu0 0.0
    %1177 = vmatpush2.msra.mxu0 0.0
    %1178 = vmatprep.subr.mxu0 0.0
    %1179 = vmatpush2.msra.mxu0 0.0
    %1180 = vmatprep.mubr.f32.mxu0 0.0
    %1181 = vmatmul.mubr.f32.gmra.mxu0 %v194
    %v1182 = vpop.f32.mrf.mxu0
    %v1183 = vadd.f32 0.0, %v1182
    %v1184 = vpop.f32.mrf.mxu0
    %v1185 = vadd.f32 0.0, %v1184
    %1186 = vmatprep.mubr.f32.mxu0 0.0
    %1187 = vmatmul.mubr.f32.gmra.mxu0 %v197
    %v1188 = vpop.f32.mrf.mxu0
    %v1189 = vadd.f32 0.0, %v1188
    %v1190 = vpop.f32.mrf.mxu0
    %v1191 = vadd.f32 0.0, %v1190
    %1192 = vmatprep.mubr.f32.mxu0 0.0
    %1193 = vmatmul.mubr.f32.gmra.mxu0 %v200
    %v1194 = vpop.f32.mrf.mxu0
    %v1195 = vadd.f32 0.0, %v1194
    %v1196 = vpop.f32.mrf.mxu0
    %v1197 = vadd.f32 0.0, %v1196
    %1198 = vmatprep.mubr.f32.mxu0 0.0
    %1199 = vmatmul.mubr.f32.gmra.mxu0 %v203
    %v1200 = vpop.f32.mrf.mxu0
    %v1201 = vadd.f32 0.0, %v1200
    %v1202 = vpop.f32.mrf.mxu0
    %v1203 = vadd.f32 0.0, %v1202
    %1204 = vmatprep.mubr.f32.mxu0 0.0
    %1205 = vmatmul.mubr.f32.gmra.mxu0 %v206
    %v1206 = vpop.f32.mrf.mxu0
    %v1207 = vadd.f32 0.0, %v1206
    %v1208 = vpop.f32.mrf.mxu0
    %v1209 = vadd.f32 0.0, %v1208
    %1210 = vmatprep.mubr.f32.mxu0 0.0
    %1211 = vmatmul.mubr.f32.gmra.mxu0 %v209
    %v1212 = vpop.f32.mrf.mxu0
    %v1213 = vadd.f32 0.0, %v1212
    %v1214 = vpop.f32.mrf.mxu0
    %v1215 = vadd.f32 0.0, %v1214
    %1216 = vdwg.mxu0
    %1217 = vmatprep.subr.mxu0 0.0
    %1218 = vmatpush1.msra.mxu0 0.0
    %1219 = vmatprep.subr.mxu0 0.0
    %1220 = vmatpush1.msra.mxu0 0.0
    %1221 = vmatprep.subr.mxu0 0.0
    %1222 = vmatpush1.msra.mxu0 0.0
    %1223 = vmatprep.subr.mxu0 0.0
    %1224 = vmatpush1.msra.mxu0 0.0
    %1225 = vmatprep.subr.mxu0 0.0
    %1226 = vmatpush1.msra.mxu0 0.0
    %1227 = vmatprep.subr.mxu0 0.0
    %1228 = vmatpush1.msra.mxu0 0.0
    %1229 = vmatprep.subr.mxu0 0.0
    %1230 = vmatpush1.msra.mxu0 0.0
    %1231 = vmatprep.subr.mxu0 0.0
    %1232 = vmatpush1.msra.mxu0 0.0
    %1233 = vmatprep.subr.mxu0 0.0
    %1234 = vmatpush1.msra.mxu0 0.0
    %1235 = vmatprep.subr.mxu0 0.0
    %1236 = vmatpush1.msra.mxu0 0.0
    %1237 = vmatprep.subr.mxu0 0.0
    %1238 = vmatpush1.msra.mxu0 0.0
    %1239 = vmatprep.subr.mxu0 %v270
    %1240 = vmatpush1.msra.mxu0 %v267
    %1241 = vmatprep.subr.mxu0 %v147
    %1242 = vmatpush1.msra.mxu0 %v146
    %1243 = vmatprep.subr.mxu0 %v115
    %1244 = vmatpush1.msra.mxu0 %v114
    %1245 = vmatprep.subr.mxu0 %v83
    %1246 = vmatpush1.msra.mxu0 %v82
    %1247 = vmatprep.subr.mxu0 %v51
    %1248 = vmatpush1.msra.mxu0 %v50
    %1249 = vmatprep.subr.mxu0 0.0
    %1250 = vmatpush2.msra.mxu0 0.0
    %1251 = vmatprep.subr.mxu0 0.0
    %1252 = vmatpush2.msra.mxu0 0.0
    %1253 = vmatprep.subr.mxu0 0.0
    %1254 = vmatpush2.msra.mxu0 0.0
    %1255 = vmatprep.subr.mxu0 0.0
    %1256 = vmatpush2.msra.mxu0 0.0
    %1257 = vmatprep.subr.mxu0 0.0
    %1258 = vmatpush2.msra.mxu0 0.0
    %1259 = vmatprep.subr.mxu0 0.0
    %1260 = vmatpush2.msra.mxu0 0.0
    %1261 = vmatprep.subr.mxu0 0.0
    %1262 = vmatpush2.msra.mxu0 0.0
    %1263 = vmatprep.subr.mxu0 0.0
    %1264 = vmatpush2.msra.mxu0 0.0
    %1265 = vmatprep.subr.mxu0 0.0
    %1266 = vmatpush2.msra.mxu0 0.0
    %1267 = vmatprep.subr.mxu0 0.0
    %1268 = vmatpush2.msra.mxu0 0.0
    %1269 = vmatprep.subr.mxu0 0.0
    %1270 = vmatpush2.msra.mxu0 0.0
    %1271 = vmatprep.subr.mxu0 0.0
    %1272 = vmatpush2.msra.mxu0 0.0
    %1273 = vmatprep.subr.mxu0 0.0
    %1274 = vmatpush2.msra.mxu0 0.0
    %1275 = vmatprep.subr.mxu0 0.0
    %1276 = vmatpush2.msra.mxu0 0.0
    %1277 = vmatprep.subr.mxu0 0.0
    %1278 = vmatpush2.msra.mxu0 0.0
    %1279 = vmatprep.subr.mxu0 0.0
    %1280 = vmatpush2.msra.mxu0 0.0
    %1281 = vmatprep.mubr.f32.mxu0 0.0
    %1282 = vmatmul.mubr.f32.gmra.mxu0 %v194
    %v1283 = vpop.f32.mrf.mxu0
    %v1284 = vadd.f32 0.0, %v1283
    %v1285 = vpop.f32.mrf.mxu0
    %v1286 = vadd.f32 0.0, %v1285
    %1287 = vmatprep.mubr.f32.mxu0 0.0
    %1288 = vmatmul.mubr.f32.gmra.mxu0 %v197
    %v1289 = vpop.f32.mrf.mxu0
    %v1290 = vadd.f32 0.0, %v1289
    %v1291 = vpop.f32.mrf.mxu0
    %v1292 = vadd.f32 0.0, %v1291
    %1293 = vmatprep.mubr.f32.mxu0 0.0
    %1294 = vmatmul.mubr.f32.gmra.mxu0 %v200
    %v1295 = vpop.f32.mrf.mxu0
    %v1296 = vadd.f32 0.0, %v1295
    %v1297 = vpop.f32.mrf.mxu0
    %v1298 = vadd.f32 0.0, %v1297
    %1299 = vmatprep.mubr.f32.mxu0 0.0
    %1300 = vmatmul.mubr.f32.gmra.mxu0 %v203
    %v1301 = vpop.f32.mrf.mxu0
    %v1302 = vadd.f32 0.0, %v1301
    %v1303 = vpop.f32.mrf.mxu0
    %v1304 = vadd.f32 0.0, %v1303
    %1305 = vmatprep.mubr.f32.mxu0 0.0
    %1306 = vmatmul.mubr.f32.gmra.mxu0 %v206
    %v1307 = vpop.f32.mrf.mxu0
    %v1308 = vadd.f32 0.0, %v1307
    %v1309 = vpop.f32.mrf.mxu0
    %v1310 = vadd.f32 0.0, %v1309
    %1311 = vmatprep.mubr.f32.mxu0 0.0
    %1312 = vmatmul.mubr.f32.gmra.mxu0 %v209
    %v1313 = vpop.f32.mrf.mxu0
    %v1314 = vadd.f32 0.0, %v1313
    %v1315 = vpop.f32.mrf.mxu0
    %v1316 = vadd.f32 0.0, %v1315
    %1317 = vdwg.mxu0
    %1318 = vmatprep.subr.mxu0 0.0
    %1319 = vmatpush1.msra.mxu0 0.0
    %1320 = vmatprep.subr.mxu0 0.0
    %1321 = vmatpush1.msra.mxu0 0.0
    %1322 = vmatprep.subr.mxu0 0.0
    %1323 = vmatpush1.msra.mxu0 0.0
    %1324 = vmatprep.subr.mxu0 0.0
    %1325 = vmatpush1.msra.mxu0 0.0
    %1326 = vmatprep.subr.mxu0 0.0
    %1327 = vmatpush1.msra.mxu0 0.0
    %1328 = vmatprep.subr.mxu0 0.0
    %1329 = vmatpush1.msra.mxu0 0.0
    %1330 = vmatprep.subr.mxu0 0.0
    %1331 = vmatpush1.msra.mxu0 0.0
    %1332 = vmatprep.subr.mxu0 0.0
    %1333 = vmatpush1.msra.mxu0 0.0
    %1334 = vmatprep.subr.mxu0 0.0
    %1335 = vmatpush1.msra.mxu0 0.0
    %1336 = vmatprep.subr.mxu0 0.0
    %1337 = vmatpush1.msra.mxu0 0.0
    %1338 = vmatprep.subr.mxu0 0.0
    %1339 = vmatpush1.msra.mxu0 0.0
    %1340 = vmatprep.subr.mxu0 %v276
    %1341 = vmatpush1.msra.mxu0 %v273
    %1342 = vmatprep.subr.mxu0 %v149
    %1343 = vmatpush1.msra.mxu0 %v148
    %1344 = vmatprep.subr.mxu0 %v117
    %1345 = vmatpush1.msra.mxu0 %v116
    %1346 = vmatprep.subr.mxu0 %v85
    %1347 = vmatpush1.msra.mxu0 %v84
    %1348 = vmatprep.subr.mxu0 %v53
    %1349 = vmatpush1.msra.mxu0 %v52
    %1350 = vmatprep.subr.mxu0 0.0
    %1351 = vmatpush2.msra.mxu0 0.0
    %1352 = vmatprep.subr.mxu0 0.0
    %1353 = vmatpush2.msra.mxu0 0.0
    %1354 = vmatprep.subr.mxu0 0.0
    %1355 = vmatpush2.msra.mxu0 0.0
    %1356 = vmatprep.subr.mxu0 0.0
    %1357 = vmatpush2.msra.mxu0 0.0
    %1358 = vmatprep.subr.mxu0 0.0
    %1359 = vmatpush2.msra.mxu0 0.0
    %1360 = vmatprep.subr.mxu0 0.0
    %1361 = vmatpush2.msra.mxu0 0.0
    %1362 = vmatprep.subr.mxu0 0.0
    %1363 = vmatpush2.msra.mxu0 0.0
    %1364 = vmatprep.subr.mxu0 0.0
    %1365 = vmatpush2.msra.mxu0 0.0
    %1366 = vmatprep.subr.mxu0 0.0
    %1367 = vmatpush2.msra.mxu0 0.0
    %1368 = vmatprep.subr.mxu0 0.0
    %1369 = vmatpush2.msra.mxu0 0.0
    %1370 = vmatprep.subr.mxu0 0.0
    %1371 = vmatpush2.msra.mxu0 0.0
    %1372 = vmatprep.subr.mxu0 0.0
    %1373 = vmatpush2.msra.mxu0 0.0
    %1374 = vmatprep.subr.mxu0 0.0
    %1375 = vmatpush2.msra.mxu0 0.0
    %1376 = vmatprep.subr.mxu0 0.0
    %1377 = vmatpush2.msra.mxu0 0.0
    %1378 = vmatprep.subr.mxu0 0.0
    %1379 = vmatpush2.msra.mxu0 0.0
    %1380 = vmatprep.subr.mxu0 0.0
    %1381 = vmatpush2.msra.mxu0 0.0
    %1382 = vmatprep.mubr.f32.mxu0 0.0
    %1383 = vmatmul.mubr.f32.gmra.mxu0 %v194
    %v1384 = vpop.f32.mrf.mxu0
    %v1385 = vadd.f32 0.0, %v1384
    %v1386 = vpop.f32.mrf.mxu0
    %v1387 = vadd.f32 0.0, %v1386
    %1388 = vmatprep.mubr.f32.mxu0 0.0
    %1389 = vmatmul.mubr.f32.gmra.mxu0 %v197
    %v1390 = vpop.f32.mrf.mxu0
    %v1391 = vadd.f32 0.0, %v1390
    %v1392 = vpop.f32.mrf.mxu0
    %v1393 = vadd.f32 0.0, %v1392
    %1394 = vmatprep.mubr.f32.mxu0 0.0
    %1395 = vmatmul.mubr.f32.gmra.mxu0 %v200
    %v1396 = vpop.f32.mrf.mxu0
    %v1397 = vadd.f32 0.0, %v1396
    %v1398 = vpop.f32.mrf.mxu0
    %v1399 = vadd.f32 0.0, %v1398
    %1400 = vmatprep.mubr.f32.mxu0 0.0
    %1401 = vmatmul.mubr.f32.gmra.mxu0 %v203
    %v1402 = vpop.f32.mrf.mxu0
    %v1403 = vadd.f32 0.0, %v1402
    %v1404 = vpop.f32.mrf.mxu0
    %v1405 = vadd.f32 0.0, %v1404
    %1406 = vmatprep.mubr.f32.mxu0 0.0
    %1407 = vmatmul.mubr.f32.gmra.mxu0 %v206
    %v1408 = vpop.f32.mrf.mxu0
    %v1409 = vadd.f32 0.0, %v1408
    %v1410 = vpop.f32.mrf.mxu0
    %v1411 = vadd.f32 0.0, %v1410
    %1412 = vmatprep.mubr.f32.mxu0 0.0
    %1413 = vmatmul.mubr.f32.gmra.mxu0 %v209
    %v1414 = vpop.f32.mrf.mxu0
    %v1415 = vadd.f32 0.0, %v1414
    %v1416 = vpop.f32.mrf.mxu0
    %v1417 = vadd.f32 0.0, %v1416
    %1418 = vdwg.mxu0
    %1419 = vmatprep.subr.mxu0 0.0
    %1420 = vmatpush1.msra.mxu0 0.0
    %1421 = vmatprep.subr.mxu0 0.0
    %1422 = vmatpush1.msra.mxu0 0.0
    %1423 = vmatprep.subr.mxu0 0.0
    %1424 = vmatpush1.msra.mxu0 0.0
    %1425 = vmatprep.subr.mxu0 0.0
    %1426 = vmatpush1.msra.mxu0 0.0
    %1427 = vmatprep.subr.mxu0 0.0
    %1428 = vmatpush1.msra.mxu0 0.0
    %1429 = vmatprep.subr.mxu0 0.0
    %1430 = vmatpush1.msra.mxu0 0.0
    %1431 = vmatprep.subr.mxu0 0.0
    %1432 = vmatpush1.msra.mxu0 0.0
    %1433 = vmatprep.subr.mxu0 0.0
    %1434 = vmatpush1.msra.mxu0 0.0
    %1435 = vmatprep.subr.mxu0 0.0
    %1436 = vmatpush1.msra.mxu0 0.0
    %1437 = vmatprep.subr.mxu0 0.0
    %1438 = vmatpush1.msra.mxu0 0.0
    %1439 = vmatprep.subr.mxu0 0.0
    %1440 = vmatpush1.msra.mxu0 0.0
    %1441 = vmatprep.subr.mxu0 %v282
    %1442 = vmatpush1.msra.mxu0 %v279
    %1443 = vmatprep.subr.mxu0 %v151
    %1444 = vmatpush1.msra.mxu0 %v150
    %1445 = vmatprep.subr.mxu0 %v119
    %1446 = vmatpush1.msra.mxu0 %v118
    %1447 = vmatprep.subr.mxu0 %v87
    %1448 = vmatpush1.msra.mxu0 %v86
    %1449 = vmatprep.subr.mxu0 %v55
    %1450 = vmatpush1.msra.mxu0 %v54
    %1451 = vmatprep.subr.mxu0 0.0
    %1452 = vmatpush2.msra.mxu0 0.0
    %1453 = vmatprep.subr.mxu0 0.0
    %1454 = vmatpush2.msra.mxu0 0.0
    %1455 = vmatprep.subr.mxu0 0.0
    %1456 = vmatpush2.msra.mxu0 0.0
    %1457 = vmatprep.subr.mxu0 0.0
    %1458 = vmatpush2.msra.mxu0 0.0
    %1459 = vmatprep.subr.mxu0 0.0
    %1460 = vmatpush2.msra.mxu0 0.0
    %1461 = vmatprep.subr.mxu0 0.0
    %1462 = vmatpush2.msra.mxu0 0.0
    %1463 = vmatprep.subr.mxu0 0.0
    %1464 = vmatpush2.msra.mxu0 0.0
    %1465 = vmatprep.subr.mxu0 0.0
    %1466 = vmatpush2.msra.mxu0 0.0
    %1467 = vmatprep.subr.mxu0 0.0
    %1468 = vmatpush2.msra.mxu0 0.0
    %1469 = vmatprep.subr.mxu0 0.0
    %1470 = vmatpush2.msra.mxu0 0.0
    %1471 = vmatprep.subr.mxu0 0.0
    %1472 = vmatpush2.msra.mxu0 0.0
    %1473 = vmatprep.subr.mxu0 0.0
    %1474 = vmatpush2.msra.mxu0 0.0
    %1475 = vmatprep.subr.mxu0 0.0
    %1476 = vmatpush2.msra.mxu0 0.0
    %1477 = vmatprep.subr.mxu0 0.0
    %1478 = vmatpush2.msra.mxu0 0.0
    %1479 = vmatprep.subr.mxu0 0.0
    %1480 = vmatpush2.msra.mxu0 0.0
    %1481 = vmatprep.subr.mxu0 0.0
    %1482 = vmatpush2.msra.mxu0 0.0
    %1483 = vmatprep.mubr.f32.mxu0 0.0
    %1484 = vmatmul.mubr.f32.gmra.mxu0 %v194
    %v1485 = vpop.f32.mrf.mxu0
    %v1486 = vadd.f32 0.0, %v1485
    %v1487 = vpop.f32.mrf.mxu0
    %v1488 = vadd.f32 0.0, %v1487
    %1489 = vmatprep.mubr.f32.mxu0 0.0
    %1490 = vmatmul.mubr.f32.gmra.mxu0 %v197
    %v1491 = vpop.f32.mrf.mxu0
    %v1492 = vadd.f32 0.0, %v1491
    %v1493 = vpop.f32.mrf.mxu0
    %v1494 = vadd.f32 0.0, %v1493
    %1495 = vmatprep.mubr.f32.mxu0 0.0
    %1496 = vmatmul.mubr.f32.gmra.mxu0 %v200
    %v1497 = vpop.f32.mrf.mxu0
    %v1498 = vadd.f32 0.0, %v1497
    %v1499 = vpop.f32.mrf.mxu0
    %v1500 = vadd.f32 0.0, %v1499
    %1501 = vmatprep.mubr.f32.mxu0 0.0
    %1502 = vmatmul.mubr.f32.gmra.mxu0 %v203
    %v1503 = vpop.f32.mrf.mxu0
    %v1504 = vadd.f32 0.0, %v1503
    %v1505 = vpop.f32.mrf.mxu0
    %v1506 = vadd.f32 0.0, %v1505
    %1507 = vmatprep.mubr.f32.mxu0 0.0
    %1508 = vmatmul.mubr.f32.gmra.mxu0 %v206
    %v1509 = vpop.f32.mrf.mxu0
    %v1510 = vadd.f32 0.0, %v1509
    %v1511 = vpop.f32.mrf.mxu0
    %v1512 = vadd.f32 0.0, %v1511
    %1513 = vmatprep.mubr.f32.mxu0 0.0
    %1514 = vmatmul.mubr.f32.gmra.mxu0 %v209
    %v1515 = vpop.f32.mrf.mxu0
    %v1516 = vadd.f32 0.0, %v1515
    %v1517 = vpop.f32.mrf.mxu0
    %v1518 = vadd.f32 0.0, %v1517
    %1519 = vdwg.mxu0
    %1520 = vmatprep.subr.mxu0 0.0
    %1521 = vmatpush1.msra.mxu0 0.0
    %1522 = vmatprep.subr.mxu0 0.0
    %1523 = vmatpush1.msra.mxu0 0.0
    %1524 = vmatprep.subr.mxu0 0.0
    %1525 = vmatpush1.msra.mxu0 0.0
    %1526 = vmatprep.subr.mxu0 0.0
    %1527 = vmatpush1.msra.mxu0 0.0
    %1528 = vmatprep.subr.mxu0 0.0
    %1529 = vmatpush1.msra.mxu0 0.0
    %1530 = vmatprep.subr.mxu0 0.0
    %1531 = vmatpush1.msra.mxu0 0.0
    %1532 = vmatprep.subr.mxu0 0.0
    %1533 = vmatpush1.msra.mxu0 0.0
    %1534 = vmatprep.subr.mxu0 0.0
    %1535 = vmatpush1.msra.mxu0 0.0
    %1536 = vmatprep.subr.mxu0 0.0
    %1537 = vmatpush1.msra.mxu0 0.0
    %1538 = vmatprep.subr.mxu0 0.0
    %1539 = vmatpush1.msra.mxu0 0.0
    %1540 = vmatprep.subr.mxu0 0.0
    %1541 = vmatpush1.msra.mxu0 0.0
    %1542 = vmatprep.subr.mxu0 %v288
    %1543 = vmatpush1.msra.mxu0 %v285
    %1544 = vmatprep.subr.mxu0 %v153
    %1545 = vmatpush1.msra.mxu0 %v152
    %1546 = vmatprep.subr.mxu0 %v121
    %1547 = vmatpush1.msra.mxu0 %v120
    %1548 = vmatprep.subr.mxu0 %v89
    %1549 = vmatpush1.msra.mxu0 %v88
    %1550 = vmatprep.subr.mxu0 %v57
    %1551 = vmatpush1.msra.mxu0 %v56
    %1552 = vmatprep.subr.mxu0 0.0
    %1553 = vmatpush2.msra.mxu0 0.0
    %1554 = vmatprep.subr.mxu0 0.0
    %1555 = vmatpush2.msra.mxu0 0.0
    %1556 = vmatprep.subr.mxu0 0.0
    %1557 = vmatpush2.msra.mxu0 0.0
    %1558 = vmatprep.subr.mxu0 0.0
    %1559 = vmatpush2.msra.mxu0 0.0
    %1560 = vmatprep.subr.mxu0 0.0
    %1561 = vmatpush2.msra.mxu0 0.0
    %1562 = vmatprep.subr.mxu0 0.0
    %1563 = vmatpush2.msra.mxu0 0.0
    %1564 = vmatprep.subr.mxu0 0.0
    %1565 = vmatpush2.msra.mxu0 0.0
    %1566 = vmatprep.subr.mxu0 0.0
    %1567 = vmatpush2.msra.mxu0 0.0
    %1568 = vmatprep.subr.mxu0 0.0
    %1569 = vmatpush2.msra.mxu0 0.0
    %1570 = vmatprep.subr.mxu0 0.0
    %1571 = vmatpush2.msra.mxu0 0.0
    %1572 = vmatprep.subr.mxu0 0.0
    %1573 = vmatpush2.msra.mxu0 0.0
    %1574 = vmatprep.subr.mxu0 0.0
    %1575 = vmatpush2.msra.mxu0 0.0
    %1576 = vmatprep.subr.mxu0 0.0
    %1577 = vmatpush2.msra.mxu0 0.0
    %1578 = vmatprep.subr.mxu0 0.0
    %1579 = vmatpush2.msra.mxu0 0.0
    %1580 = vmatprep.subr.mxu0 0.0
    %1581 = vmatpush2.msra.mxu0 0.0
    %1582 = vmatprep.subr.mxu0 0.0
    %1583 = vmatpush2.msra.mxu0 0.0
    %1584 = vmatprep.mubr.f32.mxu0 0.0
    %1585 = vmatmul.mubr.f32.gmra.mxu0 %v194
    %v1586 = vpop.f32.mrf.mxu0
    %v1587 = vadd.f32 0.0, %v1586
    %v1588 = vpop.f32.mrf.mxu0
    %v1589 = vadd.f32 0.0, %v1588
    %1590 = vmatprep.mubr.f32.mxu0 0.0
    %1591 = vmatmul.mubr.f32.gmra.mxu0 %v197
    %v1592 = vpop.f32.mrf.mxu0
    %v1593 = vadd.f32 0.0, %v1592
    %v1594 = vpop.f32.mrf.mxu0
    %v1595 = vadd.f32 0.0, %v1594
    %1596 = vmatprep.mubr.f32.mxu0 0.0
    %1597 = vmatmul.mubr.f32.gmra.mxu0 %v200
    %v1598 = vpop.f32.mrf.mxu0
    %v1599 = vadd.f32 0.0, %v1598
    %v1600 = vpop.f32.mrf.mxu0
    %v1601 = vadd.f32 0.0, %v1600
    %1602 = vmatprep.mubr.f32.mxu0 0.0
    %1603 = vmatmul.mubr.f32.gmra.mxu0 %v203
    %v1604 = vpop.f32.mrf.mxu0
    %v1605 = vadd.f32 0.0, %v1604
    %v1606 = vpop.f32.mrf.mxu0
    %v1607 = vadd.f32 0.0, %v1606
    %1608 = vmatprep.mubr.f32.mxu0 0.0
    %1609 = vmatmul.mubr.f32.gmra.mxu0 %v206
    %v1610 = vpop.f32.mrf.mxu0
    %v1611 = vadd.f32 0.0, %v1610
    %v1612 = vpop.f32.mrf.mxu0
    %v1613 = vadd.f32 0.0, %v1612
    %1614 = vmatprep.mubr.f32.mxu0 0.0
    %1615 = vmatmul.mubr.f32.gmra.mxu0 %v209
    %v1616 = vpop.f32.mrf.mxu0
    %v1617 = vadd.f32 0.0, %v1616
    %v1618 = vpop.f32.mrf.mxu0
    %v1619 = vadd.f32 0.0, %v1618
    %1620 = vdwg.mxu0
    %1621 = vmatprep.subr.mxu0 0.0
    %1622 = vmatpush1.msra.mxu0 0.0
    %1623 = vmatprep.subr.mxu0 0.0
    %1624 = vmatpush1.msra.mxu0 0.0
    %1625 = vmatprep.subr.mxu0 0.0
    %1626 = vmatpush1.msra.mxu0 0.0
    %1627 = vmatprep.subr.mxu0 0.0
    %1628 = vmatpush1.msra.mxu0 0.0
    %1629 = vmatprep.subr.mxu0 0.0
    %1630 = vmatpush1.msra.mxu0 0.0
    %1631 = vmatprep.subr.mxu0 0.0
    %1632 = vmatpush1.msra.mxu0 0.0
    %1633 = vmatprep.subr.mxu0 0.0
    %1634 = vmatpush1.msra.mxu0 0.0
    %1635 = vmatprep.subr.mxu0 0.0
    %1636 = vmatpush1.msra.mxu0 0.0
    %1637 = vmatprep.subr.mxu0 0.0
    %1638 = vmatpush1.msra.mxu0 0.0
    %1639 = vmatprep.subr.mxu0 0.0
    %1640 = vmatpush1.msra.mxu0 0.0
    %1641 = vmatprep.subr.mxu0 0.0
    %1642 = vmatpush1.msra.mxu0 0.0
    %1643 = vmatprep.subr.mxu0 %v294
    %1644 = vmatpush1.msra.mxu0 %v291
    %1645 = vmatprep.subr.mxu0 %v155
    %1646 = vmatpush1.msra.mxu0 %v154
    %1647 = vmatprep.subr.mxu0 %v123
    %1648 = vmatpush1.msra.mxu0 %v122
    %1649 = vmatprep.subr.mxu0 %v91
    %1650 = vmatpush1.msra.mxu0 %v90
    %1651 = vmatprep.subr.mxu0 %v59
    %1652 = vmatpush1.msra.mxu0 %v58
    %1653 = vmatprep.subr.mxu0 0.0
    %1654 = vmatpush2.msra.mxu0 0.0
    %1655 = vmatprep.subr.mxu0 0.0
    %1656 = vmatpush2.msra.mxu0 0.0
    %1657 = vmatprep.subr.mxu0 0.0
    %1658 = vmatpush2.msra.mxu0 0.0
    %1659 = vmatprep.subr.mxu0 0.0
    %1660 = vmatpush2.msra.mxu0 0.0
    %1661 = vmatprep.subr.mxu0 0.0
    %1662 = vmatpush2.msra.mxu0 0.0
    %1663 = vmatprep.subr.mxu0 0.0
    %1664 = vmatpush2.msra.mxu0 0.0
    %1665 = vmatprep.subr.mxu0 0.0
    %1666 = vmatpush2.msra.mxu0 0.0
    %1667 = vmatprep.subr.mxu0 0.0
    %1668 = vmatpush2.msra.mxu0 0.0
    %1669 = vmatprep.subr.mxu0 0.0
    %1670 = vmatpush2.msra.mxu0 0.0
    %1671 = vmatprep.subr.mxu0 0.0
    %1672 = vmatpush2.msra.mxu0 0.0
    %1673 = vmatprep.subr.mxu0 0.0
    %1674 = vmatpush2.msra.mxu0 0.0
    %1675 = vmatprep.subr.mxu0 0.0
    %1676 = vmatpush2.msra.mxu0 0.0
    %1677 = vmatprep.subr.mxu0 0.0
    %1678 = vmatpush2.msra.mxu0 0.0
    %1679 = vmatprep.subr.mxu0 0.0
    %1680 = vmatpush2.msra.mxu0 0.0
    %1681 = vmatprep.subr.mxu0 0.0
    %1682 = vmatpush2.msra.mxu0 0.0
    %1683 = vmatprep.subr.mxu0 0.0
    %1684 = vmatpush2.msra.mxu0 0.0
    %1685 = vmatprep.mubr.f32.mxu0 0.0
    %1686 = vmatmul.mubr.f32.gmra.mxu0 %v194
    %v1687 = vpop.f32.mrf.mxu0
    %v1688 = vadd.f32 0.0, %v1687
    %v1689 = vpop.f32.mrf.mxu0
    %v1690 = vadd.f32 0.0, %v1689
    %1691 = vmatprep.mubr.f32.mxu0 0.0
    %1692 = vmatmul.mubr.f32.gmra.mxu0 %v197
    %v1693 = vpop.f32.mrf.mxu0
    %v1694 = vadd.f32 0.0, %v1693
    %v1695 = vpop.f32.mrf.mxu0
    %v1696 = vadd.f32 0.0, %v1695
    %1697 = vmatprep.mubr.f32.mxu0 0.0
    %1698 = vmatmul.mubr.f32.gmra.mxu0 %v200
    %v1699 = vpop.f32.mrf.mxu0
    %v1700 = vadd.f32 0.0, %v1699
    %v1701 = vpop.f32.mrf.mxu0
    %v1702 = vadd.f32 0.0, %v1701
    %1703 = vmatprep.mubr.f32.mxu0 0.0
    %1704 = vmatmul.mubr.f32.gmra.mxu0 %v203
    %v1705 = vpop.f32.mrf.mxu0
    %v1706 = vadd.f32 0.0, %v1705
    %v1707 = vpop.f32.mrf.mxu0
    %v1708 = vadd.f32 0.0, %v1707
    %1709 = vmatprep.mubr.f32.mxu0 0.0
    %1710 = vmatmul.mubr.f32.gmra.mxu0 %v206
    %v1711 = vpop.f32.mrf.mxu0
    %v1712 = vadd.f32 0.0, %v1711
    %v1713 = vpop.f32.mrf.mxu0
    %v1714 = vadd.f32 0.0, %v1713
    %1715 = vmatprep.mubr.f32.mxu0 0.0
    %1716 = vmatmul.mubr.f32.gmra.mxu0 %v209
    %v1717 = vpop.f32.mrf.mxu0
    %v1718 = vadd.f32 0.0, %v1717
    %v1719 = vpop.f32.mrf.mxu0
    %v1720 = vadd.f32 0.0, %v1719
    %1721 = vdwg.mxu0
    %1722 = vmatprep.subr.mxu0 0.0
    %1723 = vmatpush1.msra.mxu0 0.0
    %1724 = vmatprep.subr.mxu0 0.0
    %1725 = vmatpush1.msra.mxu0 0.0
    %1726 = vmatprep.subr.mxu0 0.0
    %1727 = vmatpush1.msra.mxu0 0.0
    %1728 = vmatprep.subr.mxu0 0.0
    %1729 = vmatpush1.msra.mxu0 0.0
    %1730 = vmatprep.subr.mxu0 0.0
    %1731 = vmatpush1.msra.mxu0 0.0
    %1732 = vmatprep.subr.mxu0 0.0
    %1733 = vmatpush1.msra.mxu0 0.0
    %1734 = vmatprep.subr.mxu0 0.0
    %1735 = vmatpush1.msra.mxu0 0.0
    %1736 = vmatprep.subr.mxu0 0.0
    %1737 = vmatpush1.msra.mxu0 0.0
    %1738 = vmatprep.subr.mxu0 0.0
    %1739 = vmatpush1.msra.mxu0 0.0
    %1740 = vmatprep.subr.mxu0 0.0
    %1741 = vmatpush1.msra.mxu0 0.0
    %1742 = vmatprep.subr.mxu0 0.0
    %1743 = vmatpush1.msra.mxu0 0.0
    %1744 = vmatprep.subr.mxu0 %v300
    %1745 = vmatpush1.msra.mxu0 %v297
    %1746 = vmatprep.subr.mxu0 %v157
    %1747 = vmatpush1.msra.mxu0 %v156
    %1748 = vmatprep.subr.mxu0 %v125
    %1749 = vmatpush1.msra.mxu0 %v124
    %1750 = vmatprep.subr.mxu0 %v93
    %1751 = vmatpush1.msra.mxu0 %v92
    %1752 = vmatprep.subr.mxu0 %v61
    %1753 = vmatpush1.msra.mxu0 %v60
    %1754 = vmatprep.subr.mxu0 0.0
    %1755 = vmatpush2.msra.mxu0 0.0
    %1756 = vmatprep.subr.mxu0 0.0
    %1757 = vmatpush2.msra.mxu0 0.0
    %1758 = vmatprep.subr.mxu0 0.0
    %1759 = vmatpush2.msra.mxu0 0.0
    %1760 = vmatprep.subr.mxu0 0.0
    %1761 = vmatpush2.msra.mxu0 0.0
    %1762 = vmatprep.subr.mxu0 0.0
    %1763 = vmatpush2.msra.mxu0 0.0
    %1764 = vmatprep.subr.mxu0 0.0
    %1765 = vmatpush2.msra.mxu0 0.0
    %1766 = vmatprep.subr.mxu0 0.0
    %1767 = vmatpush2.msra.mxu0 0.0
    %1768 = vmatprep.subr.mxu0 0.0
    %1769 = vmatpush2.msra.mxu0 0.0
    %1770 = vmatprep.subr.mxu0 0.0
    %1771 = vmatpush2.msra.mxu0 0.0
    %1772 = vmatprep.subr.mxu0 0.0
    %1773 = vmatpush2.msra.mxu0 0.0
    %1774 = vmatprep.subr.mxu0 0.0
    %1775 = vmatpush2.msra.mxu0 0.0
    %1776 = vmatprep.subr.mxu0 0.0
    %1777 = vmatpush2.msra.mxu0 0.0
    %1778 = vmatprep.subr.mxu0 0.0
    %1779 = vmatpush2.msra.mxu0 0.0
    %1780 = vmatprep.subr.mxu0 0.0
    %1781 = vmatpush2.msra.mxu0 0.0
    %1782 = vmatprep.subr.mxu0 0.0
    %1783 = vmatpush2.msra.mxu0 0.0
    %1784 = vmatprep.subr.mxu0 0.0
    %1785 = vmatpush2.msra.mxu0 0.0
    %1786 = vmatprep.mubr.f32.mxu0 0.0
    %1787 = vmatmul.mubr.f32.gmra.mxu0 %v194
    %v1788 = vpop.f32.mrf.mxu0
    %v1789 = vadd.f32 0.0, %v1788
    %v1790 = vpop.f32.mrf.mxu0
    %v1791 = vadd.f32 0.0, %v1790
    %1792 = vmatprep.mubr.f32.mxu0 0.0
    %1793 = vmatmul.mubr.f32.gmra.mxu0 %v197
    %v1794 = vpop.f32.mrf.mxu0
    %v1795 = vadd.f32 0.0, %v1794
    %v1796 = vpop.f32.mrf.mxu0
    %v1797 = vadd.f32 0.0, %v1796
    %1798 = vmatprep.mubr.f32.mxu0 0.0
    %1799 = vmatmul.mubr.f32.gmra.mxu0 %v200
    %v1800 = vpop.f32.mrf.mxu0
    %v1801 = vadd.f32 0.0, %v1800
    %v1802 = vpop.f32.mrf.mxu0
    %v1803 = vadd.f32 0.0, %v1802
    %1804 = vmatprep.mubr.f32.mxu0 0.0
    %1805 = vmatmul.mubr.f32.gmra.mxu0 %v203
    %v1806 = vpop.f32.mrf.mxu0
    %v1807 = vadd.f32 0.0, %v1806
    %v1808 = vpop.f32.mrf.mxu0
    %v1809 = vadd.f32 0.0, %v1808
    %1810 = vmatprep.mubr.f32.mxu0 0.0
    %1811 = vmatmul.mubr.f32.gmra.mxu0 %v206
    %v1812 = vpop.f32.mrf.mxu0
    %v1813 = vadd.f32 0.0, %v1812
    %v1814 = vpop.f32.mrf.mxu0
    %v1815 = vadd.f32 0.0, %v1814
    %1816 = vmatprep.mubr.f32.mxu0 0.0
    %1817 = vmatmul.mubr.f32.gmra.mxu0 %v209
    %v1818 = vpop.f32.mrf.mxu0
    %v1819 = vadd.f32 0.0, %v1818
    %v1820 = vpop.f32.mrf.mxu0
    %v1821 = vadd.f32 0.0, %v1820
    %1822 = vdwg.mxu0
    %1823 = vmatprep.subr.mxu0 0.0
    %1824 = vmatpush1.msra.mxu0 0.0
    %1825 = vmatprep.subr.mxu0 0.0
    %1826 = vmatpush1.msra.mxu0 0.0
    %1827 = vmatprep.subr.mxu0 0.0
    %1828 = vmatpush1.msra.mxu0 0.0
    %1829 = vmatprep.subr.mxu0 0.0
    %1830 = vmatpush1.msra.mxu0 0.0
    %1831 = vmatprep.subr.mxu0 0.0
    %1832 = vmatpush1.msra.mxu0 0.0
    %1833 = vmatprep.subr.mxu0 0.0
    %1834 = vmatpush1.msra.mxu0 0.0
    %1835 = vmatprep.subr.mxu0 0.0
    %1836 = vmatpush1.msra.mxu0 0.0
    %1837 = vmatprep.subr.mxu0 0.0
    %1838 = vmatpush1.msra.mxu0 0.0
    %1839 = vmatprep.subr.mxu0 0.0
    %1840 = vmatpush1.msra.mxu0 0.0
    %1841 = vmatprep.subr.mxu0 0.0
    %1842 = vmatpush1.msra.mxu0 0.0
    %1843 = vmatprep.subr.mxu0 0.0
    %1844 = vmatpush1.msra.mxu0 0.0
    %1845 = vmatprep.subr.mxu0 %v306
    %1846 = vmatpush1.msra.mxu0 %v303
    %1847 = vmatprep.subr.mxu0 %v159
    %1848 = vmatpush1.msra.mxu0 %v158
    %1849 = vmatprep.subr.mxu0 %v127
    %1850 = vmatpush1.msra.mxu0 %v126
    %1851 = vmatprep.subr.mxu0 %v95
    %1852 = vmatpush1.msra.mxu0 %v94
    %1853 = vmatprep.subr.mxu0 %v63
    %1854 = vmatpush1.msra.mxu0 %v62
    %1855 = vmatprep.subr.mxu0 0.0
    %1856 = vmatpush2.msra.mxu0 0.0
    %1857 = vmatprep.subr.mxu0 0.0
    %1858 = vmatpush2.msra.mxu0 0.0
    %1859 = vmatprep.subr.mxu0 0.0
    %1860 = vmatpush2.msra.mxu0 0.0
    %1861 = vmatprep.subr.mxu0 0.0
    %1862 = vmatpush2.msra.mxu0 0.0
    %1863 = vmatprep.subr.mxu0 0.0
    %1864 = vmatpush2.msra.mxu0 0.0
    %1865 = vmatprep.subr.mxu0 0.0
    %1866 = vmatpush2.msra.mxu0 0.0
    %1867 = vmatprep.subr.mxu0 0.0
    %1868 = vmatpush2.msra.mxu0 0.0
    %1869 = vmatprep.subr.mxu0 0.0
    %1870 = vmatpush2.msra.mxu0 0.0
    %1871 = vmatprep.subr.mxu0 0.0
    %1872 = vmatpush2.msra.mxu0 0.0
    %1873 = vmatprep.subr.mxu0 0.0
    %1874 = vmatpush2.msra.mxu0 0.0
    %1875 = vmatprep.subr.mxu0 0.0
    %1876 = vmatpush2.msra.mxu0 0.0
    %1877 = vmatprep.subr.mxu0 0.0
    %1878 = vmatpush2.msra.mxu0 0.0
    %1879 = vmatprep.subr.mxu0 0.0
    %1880 = vmatpush2.msra.mxu0 0.0
    %1881 = vmatprep.subr.mxu0 0.0
    %1882 = vmatpush2.msra.mxu0 0.0
    %1883 = vmatprep.subr.mxu0 0.0
    %1884 = vmatpush2.msra.mxu0 0.0
    %1885 = vmatprep.subr.mxu0 0.0
    %1886 = vmatpush2.msra.mxu0 0.0
    %1887 = vmatprep.mubr.f32.mxu0 0.0
    %1888 = vmatmul.mubr.f32.gmra.mxu0 %v194
    %v1889 = vpop.f32.mrf.mxu0
    %v1890 = vadd.f32 0.0, %v1889
    %v1891 = vpop.f32.mrf.mxu0
    %v1892 = vadd.f32 0.0, %v1891
    %1893 = vmatprep.mubr.f32.mxu0 0.0
    %1894 = vmatmul.mubr.f32.gmra.mxu0 %v197
    %v1895 = vpop.f32.mrf.mxu0
    %v1896 = vadd.f32 0.0, %v1895
    %v1897 = vpop.f32.mrf.mxu0
    %v1898 = vadd.f32 0.0, %v1897
    %1899 = vmatprep.mubr.f32.mxu0 0.0
    %1900 = vmatmul.mubr.f32.gmra.mxu0 %v200
    %v1901 = vpop.f32.mrf.mxu0
    %v1902 = vadd.f32 0.0, %v1901
    %v1903 = vpop.f32.mrf.mxu0
    %v1904 = vadd.f32 0.0, %v1903
    %1905 = vmatprep.mubr.f32.mxu0 0.0
    %1906 = vmatmul.mubr.f32.gmra.mxu0 %v203
    %v1907 = vpop.f32.mrf.mxu0
    %v1908 = vadd.f32 0.0, %v1907
    %v1909 = vpop.f32.mrf.mxu0
    %v1910 = vadd.f32 0.0, %v1909
    %1911 = vmatprep.mubr.f32.mxu0 0.0
    %1912 = vmatmul.mubr.f32.gmra.mxu0 %v206
    %v1913 = vpop.f32.mrf.mxu0
    %v1914 = vadd.f32 0.0, %v1913
    %v1915 = vpop.f32.mrf.mxu0
    %v1916 = vadd.f32 0.0, %v1915
    %1917 = vmatprep.mubr.f32.mxu0 0.0
    %1918 = vmatmul.mubr.f32.gmra.mxu0 %v209
    %v1919 = vpop.f32.mrf.mxu0
    %v1920 = vadd.f32 0.0, %v1919
    %v1921 = vpop.f32.mrf.mxu0
    %v1922 = vadd.f32 0.0, %v1921
    %1923 = vdwg.mxu0
    %1924 = vst [vmem:[#allocation5] sm:$0xff] %v375
    %1925 = vst [vmem:[#allocation5 + $0x8] sm:$0xff] %v377
    %1926 = vst [vmem:[#allocation5 + $0x10] sm:$0xff] %v476
    %1927 = vst [vmem:[#allocation5 + $0x18] sm:$0xff] %v478
    %1928 = vst [vmem:[#allocation5 + $0x20] sm:$0xff] %v577
    %1929 = vst [vmem:[#allocation5 + $0x28] sm:$0xff] %v579
    %1930 = vst [vmem:[#allocation5 + $0x30] sm:$0xff] %v678
    %1931 = vst [vmem:[#allocation5 + $0x38] sm:$0xff] %v680
    %1932 = vst [vmem:[#allocation5 + $0x40] sm:$0xff] %v779
    %1933 = vst [vmem:[#allocation5 + $0x48] sm:$0xff] %v781
    %1934 = vst [vmem:[#allocation5 + $0x50] sm:$0xff] %v880
    %1935 = vst [vmem:[#allocation5 + $0x58] sm:$0xff] %v882
    %1936 = vst [vmem:[#allocation5 + $0x60] sm:$0xff] %v981
    %1937 = vst [vmem:[#allocation5 + $0x68] sm:$0xff] %v983
    %1938 = vst [vmem:[#allocation5 + $0x70] sm:$0xff] %v1082
    %1939 = vst [vmem:[#allocation5 + $0x78] sm:$0xff] %v1084
    %1940 = vst [vmem:[#allocation5 + $0x80] sm:$0xff] %v1183
    %1941 = vst [vmem:[#allocation5 + $0x88] sm:$0xff] %v1185
    %1942 = vst [vmem:[#allocation5 + $0x90] sm:$0xff] %v1284
    %1943 = vst [vmem:[#allocation5 + $0x98] sm:$0xff] %v1286
    %1944 = vst [vmem:[#allocation5 + $0xa0] sm:$0xff] %v1385
    %1945 = vst [vmem:[#allocation5 + $0xa8] sm:$0xff] %v1387
    %1946 = vst [vmem:[#allocation5 + $0xb0] sm:$0xff] %v1486
    %1947 = vst [vmem:[#allocation5 + $0xb8] sm:$0xff] %v1488
    %1948 = vst [vmem:[#allocation5 + $0xc0] sm:$0xff] %v1587
    %1949 = vst [vmem:[#allocation5 + $0xc8] sm:$0xff] %v1589
    %1950 = vst [vmem:[#allocation5 + $0xd0] sm:$0xff] %v1688
    %1951 = vst [vmem:[#allocation5 + $0xd8] sm:$0xff] %v1690
    %1952 = vst [vmem:[#allocation5 + $0xe0] sm:$0xff] %v1789
    %1953 = vst [vmem:[#allocation5 + $0xe8] sm:$0xff] %v1791
    %1954 = vst [vmem:[#allocation5 + $0xf0] sm:$0xff] %v1890
    %1955 = vst [vmem:[#allocation5 + $0xf8] sm:$0xff] %v1892
    %1956 = vst [vmem:[#allocation5 + $0x100] sm:$0xff] %v381
    %1957 = vst [vmem:[#allocation5 + $0x108] sm:$0xff] %v383
    %1958 = vst [vmem:[#allocation5 + $0x110] sm:$0xff] %v482
    %1959 = vst [vmem:[#allocation5 + $0x118] sm:$0xff] %v484
    %1960 = vst [vmem:[#allocation5 + $0x120] sm:$0xff] %v583
    %1961 = vst [vmem:[#allocation5 + $0x128] sm:$0xff] %v585
    %1962 = vst [vmem:[#allocation5 + $0x130] sm:$0xff] %v684
    %1963 = vst [vmem:[#allocation5 + $0x138] sm:$0xff] %v686
    %1964 = vst [vmem:[#allocation5 + $0x140] sm:$0xff] %v785
    %1965 = vst [vmem:[#allocation5 + $0x148] sm:$0xff] %v787
    %1966 = vst [vmem:[#allocation5 + $0x150] sm:$0xff] %v886
    %1967 = vst [vmem:[#allocation5 + $0x158] sm:$0xff] %v888
    %1968 = vst [vmem:[#allocation5 + $0x160] sm:$0xff] %v987
    %1969 = vst [vmem:[#allocation5 + $0x168] sm:$0xff] %v989
    %1970 = vst [vmem:[#allocation5 + $0x170] sm:$0xff] %v1088
    %1971 = vst [vmem:[#allocation5 + $0x178] sm:$0xff] %v1090
    %1972 = vst [vmem:[#allocation5 + $0x180] sm:$0xff] %v1189
    %1973 = vst [vmem:[#allocation5 + $0x188] sm:$0xff] %v1191
    %1974 = vst [vmem:[#allocation5 + $0x190] sm:$0xff] %v1290
    %1975 = vst [vmem:[#allocation5 + $0x198] sm:$0xff] %v1292
    %1976 = vst [vmem:[#allocation5 + $0x1a0] sm:$0xff] %v1391
    %1977 = vst [vmem:[#allocation5 + $0x1a8] sm:$0xff] %v1393
    %1978 = vst [vmem:[#allocation5 + $0x1b0] sm:$0xff] %v1492
    %1979 = vst [vmem:[#allocation5 + $0x1b8] sm:$0xff] %v1494
    %1980 = vst [vmem:[#allocation5 + $0x1c0] sm:$0xff] %v1593
    %1981 = vst [vmem:[#allocation5 + $0x1c8] sm:$0xff] %v1595
    %1982 = vst [vmem:[#allocation5 + $0x1d0] sm:$0xff] %v1694
    %1983 = vst [vmem:[#allocation5 + $0x1d8] sm:$0xff] %v1696
    %1984 = vst [vmem:[#allocation5 + $0x1e0] sm:$0xff] %v1795
    %1985 = vst [vmem:[#allocation5 + $0x1e8] sm:$0xff] %v1797
    %1986 = vst [vmem:[#allocation5 + $0x1f0] sm:$0xff] %v1896
    %1987 = vst [vmem:[#allocation5 + $0x1f8] sm:$0xff] %v1898
    %1988 = vst [vmem:[#allocation5 + $0x200] sm:$0xff] %v387
    %1989 = vst [vmem:[#allocation5 + $0x208] sm:$0xff] %v389
    %1990 = vst [vmem:[#allocation5 + $0x210] sm:$0xff] %v488
    %1991 = vst [vmem:[#allocation5 + $0x218] sm:$0xff] %v490
    %1992 = vst [vmem:[#allocation5 + $0x220] sm:$0xff] %v589
    %1993 = vst [vmem:[#allocation5 + $0x228] sm:$0xff] %v591
    %1994 = vst [vmem:[#allocation5 + $0x230] sm:$0xff] %v690
    %1995 = vst [vmem:[#allocation5 + $0x238] sm:$0xff] %v692
    %1996 = vst [vmem:[#allocation5 + $0x240] sm:$0xff] %v791
    %1997 = vst [vmem:[#allocation5 + $0x248] sm:$0xff] %v793
    %1998 = vst [vmem:[#allocation5 + $0x250] sm:$0xff] %v892
    %1999 = vst [vmem:[#allocation5 + $0x258] sm:$0xff] %v894
    %2000 = vst [vmem:[#allocation5 + $0x260] sm:$0xff] %v993
    %2001 = vst [vmem:[#allocation5 + $0x268] sm:$0xff] %v995
    %2002 = vst [vmem:[#allocation5 + $0x270] sm:$0xff] %v1094
    %2003 = vst [vmem:[#allocation5 + $0x278] sm:$0xff] %v1096
    %2004 = vst [vmem:[#allocation5 + $0x280] sm:$0xff] %v1195
    %2005 = vst [vmem:[#allocation5 + $0x288] sm:$0xff] %v1197
    %2006 = vst [vmem:[#allocation5 + $0x290] sm:$0xff] %v1296
    %2007 = vst [vmem:[#allocation5 + $0x298] sm:$0xff] %v1298
    %2008 = vst [vmem:[#allocation5 + $0x2a0] sm:$0xff] %v1397
    %2009 = vst [vmem:[#allocation5 + $0x2a8] sm:$0xff] %v1399
    %2010 = vst [vmem:[#allocation5 + $0x2b0] sm:$0xff] %v1498
    %2011 = vst [vmem:[#allocation5 + $0x2b8] sm:$0xff] %v1500
    %2012 = vst [vmem:[#allocation5 + $0x2c0] sm:$0xff] %v1599
    %2013 = vst [vmem:[#allocation5 + $0x2c8] sm:$0xff] %v1601
    %2014 = vst [vmem:[#allocation5 + $0x2d0] sm:$0xff] %v1700
    %2015 = vst [vmem:[#allocation5 + $0x2d8] sm:$0xff] %v1702
    %2016 = vst [vmem:[#allocation5 + $0x2e0] sm:$0xff] %v1801
    %2017 = vst [vmem:[#allocation5 + $0x2e8] sm:$0xff] %v1803
    %2018 = vst [vmem:[#allocation5 + $0x2f0] sm:$0xff] %v1902
    %2019 = vst [vmem:[#allocation5 + $0x2f8] sm:$0xff] %v1904
    %2020 = vst [vmem:[#allocation5 + $0x300] sm:$0xff] %v393
    %2021 = vst [vmem:[#allocation5 + $0x308] sm:$0xff] %v395
    %2022 = vst [vmem:[#allocation5 + $0x310] sm:$0xff] %v494
    %2023 = vst [vmem:[#allocation5 + $0x318] sm:$0xff] %v496
    %2024 = vst [vmem:[#allocation5 + $0x320] sm:$0xff] %v595
    %2025 = vst [vmem:[#allocation5 + $0x328] sm:$0xff] %v597
    %2026 = vst [vmem:[#allocation5 + $0x330] sm:$0xff] %v696
    %2027 = vst [vmem:[#allocation5 + $0x338] sm:$0xff] %v698
    %2028 = vst [vmem:[#allocation5 + $0x340] sm:$0xff] %v797
    %2029 = vst [vmem:[#allocation5 + $0x348] sm:$0xff] %v799
    %2030 = vst [vmem:[#allocation5 + $0x350] sm:$0xff] %v898
    %2031 = vst [vmem:[#allocation5 + $0x358] sm:$0xff] %v900
    %2032 = vst [vmem:[#allocation5 + $0x360] sm:$0xff] %v999
    %2033 = vst [vmem:[#allocation5 + $0x368] sm:$0xff] %v1001
    %2034 = vst [vmem:[#allocation5 + $0x370] sm:$0xff] %v1100
    %2035 = vst [vmem:[#allocation5 + $0x378] sm:$0xff] %v1102
    %2036 = vst [vmem:[#allocation5 + $0x380] sm:$0xff] %v1201
    %2037 = vst [vmem:[#allocation5 + $0x388] sm:$0xff] %v1203
    %2038 = vst [vmem:[#allocation5 + $0x390] sm:$0xff] %v1302
    %2039 = vst [vmem:[#allocation5 + $0x398] sm:$0xff] %v1304
    %2040 = vst [vmem:[#allocation5 + $0x3a0] sm:$0xff] %v1403
    %2041 = vst [vmem:[#allocation5 + $0x3a8] sm:$0xff] %v1405
    %2042 = vst [vmem:[#allocation5 + $0x3b0] sm:$0xff] %v1504
    %2043 = vst [vmem:[#allocation5 + $0x3b8] sm:$0xff] %v1506
    %2044 = vst [vmem:[#allocation5 + $0x3c0] sm:$0xff] %v1605
    %2045 = vst [vmem:[#allocation5 + $0x3c8] sm:$0xff] %v1607
    %2046 = vst [vmem:[#allocation5 + $0x3d0] sm:$0xff] %v1706
    %2047 = vst [vmem:[#allocation5 + $0x3d8] sm:$0xff] %v1708
    %2048 = vst [vmem:[#allocation5 + $0x3e0] sm:$0xff] %v1807
    %2049 = vst [vmem:[#allocation5 + $0x3e8] sm:$0xff] %v1809
    %2050 = vst [vmem:[#allocation5 + $0x3f0] sm:$0xff] %v1908
    %2051 = vst [vmem:[#allocation5 + $0x3f8] sm:$0xff] %v1910
    %2052 = vst [vmem:[#allocation5 + $0x400] sm:$0xff] %v399
    %2053 = vst [vmem:[#allocation5 + $0x408] sm:$0xff] %v401
    %2054 = vst [vmem:[#allocation5 + $0x410] sm:$0xff] %v500
    %2055 = vst [vmem:[#allocation5 + $0x418] sm:$0xff] %v502
    %2056 = vst [vmem:[#allocation5 + $0x420] sm:$0xff] %v601
    %2057 = vst [vmem:[#allocation5 + $0x428] sm:$0xff] %v603
    %2058 = vst [vmem:[#allocation5 + $0x430] sm:$0xff] %v702
    %2059 = vst [vmem:[#allocation5 + $0x438] sm:$0xff] %v704
    %2060 = vst [vmem:[#allocation5 + $0x440] sm:$0xff] %v803
    %2061 = vst [vmem:[#allocation5 + $0x448] sm:$0xff] %v805
    %2062 = vst [vmem:[#allocation5 + $0x450] sm:$0xff] %v904
    %2063 = vst [vmem:[#allocation5 + $0x458] sm:$0xff] %v906
    %2064 = vst [vmem:[#allocation5 + $0x460] sm:$0xff] %v1005
    %2065 = vst [vmem:[#allocation5 + $0x468] sm:$0xff] %v1007
    %2066 = vst [vmem:[#allocation5 + $0x470] sm:$0xff] %v1106
    %2067 = vst [vmem:[#allocation5 + $0x478] sm:$0xff] %v1108
    %2068 = vst [vmem:[#allocation5 + $0x480] sm:$0xff] %v1207
    %2069 = vst [vmem:[#allocation5 + $0x488] sm:$0xff] %v1209
    %2070 = vst [vmem:[#allocation5 + $0x490] sm:$0xff] %v1308
    %2071 = vst [vmem:[#allocation5 + $0x498] sm:$0xff] %v1310
    %2072 = vst [vmem:[#allocation5 + $0x4a0] sm:$0xff] %v1409
    %2073 = vst [vmem:[#allocation5 + $0x4a8] sm:$0xff] %v1411
    %2074 = vst [vmem:[#allocation5 + $0x4b0] sm:$0xff] %v1510
    %2075 = vst [vmem:[#allocation5 + $0x4b8] sm:$0xff] %v1512
    %2076 = vst [vmem:[#allocation5 + $0x4c0] sm:$0xff] %v1611
    %2077 = vst [vmem:[#allocation5 + $0x4c8] sm:$0xff] %v1613
    %2078 = vst [vmem:[#allocation5 + $0x4d0] sm:$0xff] %v1712
    %2079 = vst [vmem:[#allocation5 + $0x4d8] sm:$0xff] %v1714
    %2080 = vst [vmem:[#allocation5 + $0x4e0] sm:$0xff] %v1813
    %2081 = vst [vmem:[#allocation5 + $0x4e8] sm:$0xff] %v1815
    %2082 = vst [vmem:[#allocation5 + $0x4f0] sm:$0xff] %v1914
    %2083 = vst [vmem:[#allocation5 + $0x4f8] sm:$0xff] %v1916
    %2084 = vst [vmem:[#allocation5 + $0x500] sm:$0xff] %v405
    %2085 = vst [vmem:[#allocation5 + $0x508] sm:$0xff] %v407
    %2086 = vst [vmem:[#allocation5 + $0x510] sm:$0xff] %v506
    %2087 = vst [vmem:[#allocation5 + $0x518] sm:$0xff] %v508
    %2088 = vst [vmem:[#allocation5 + $0x520] sm:$0xff] %v607
    %2089 = vst [vmem:[#allocation5 + $0x528] sm:$0xff] %v609
    %2090 = vst [vmem:[#allocation5 + $0x530] sm:$0xff] %v708
    %2091 = vst [vmem:[#allocation5 + $0x538] sm:$0xff] %v710
    %2092 = vst [vmem:[#allocation5 + $0x540] sm:$0xff] %v809
    %2093 = vst [vmem:[#allocation5 + $0x548] sm:$0xff] %v811
    %2094 = vst [vmem:[#allocation5 + $0x550] sm:$0xff] %v910
    %2095 = vst [vmem:[#allocation5 + $0x558] sm:$0xff] %v912
    %2096 = vst [vmem:[#allocation5 + $0x560] sm:$0xff] %v1011
    %2097 = vst [vmem:[#allocation5 + $0x568] sm:$0xff] %v1013
    %2098 = vst [vmem:[#allocation5 + $0x570] sm:$0xff] %v1112
    %2099 = vst [vmem:[#allocation5 + $0x578] sm:$0xff] %v1114
    %2100 = vst [vmem:[#allocation5 + $0x580] sm:$0xff] %v1213
    %2101 = vst [vmem:[#allocation5 + $0x588] sm:$0xff] %v1215
    %2102 = vst [vmem:[#allocation5 + $0x590] sm:$0xff] %v1314
    %2103 = vst [vmem:[#allocation5 + $0x598] sm:$0xff] %v1316
    %2104 = vst [vmem:[#allocation5 + $0x5a0] sm:$0xff] %v1415
    %2105 = vst [vmem:[#allocation5 + $0x5a8] sm:$0xff] %v1417
    %2106 = vst [vmem:[#allocation5 + $0x5b0] sm:$0xff] %v1516
    %2107 = vst [vmem:[#allocation5 + $0x5b8] sm:$0xff] %v1518
    %2108 = vst [vmem:[#allocation5 + $0x5c0] sm:$0xff] %v1617
    %2109 = vst [vmem:[#allocation5 + $0x5c8] sm:$0xff] %v1619
    %2110 = vst [vmem:[#allocation5 + $0x5d0] sm:$0xff] %v1718
    %2111 = vst [vmem:[#allocation5 + $0x5d8] sm:$0xff] %v1720
    %2112 = vst [vmem:[#allocation5 + $0x5e0] sm:$0xff] %v1819
    %2113 = vst [vmem:[#allocation5 + $0x5e8] sm:$0xff] %v1821
    %2114 = vst [vmem:[#allocation5 + $0x5f0] sm:$0xff] %v1920
    %2115 = vst [vmem:[#allocation5 + $0x5f8] sm:$0xff] %v1922
    // Predicated region
    $region14: #{tpu_custom_call.1} parent=1 // pred_check
      _
    $region15: #{tpu_custom_call.1} parent=1 // pred_check_branch
      %2117 = sbr.rel (0) target = $region17
    $region16: #{tpu_custom_call.1} parent=1 // pred_region
      %s2119 = ssub.s32 24576, 24576
      %2120 = vsyncadd [#allocation4], %s2119
      %s2121 = sshll.u32 [#allocation5], 4
      %s2122 = int_to_ptr.vmem [resolvable:$true] %s2121
      %2127 = dma.vmem_to_hbm [thread:$0]  %s2122, 24576, %s2, [#allocation4], 4096, 4096, 256
    $region17: #{tpu_custom_call.1} parent=1 // pred_fallthru
      _
    // Predicated region
    $region18: #{tpu_custom_call.1} parent=1 // pred_check
      _
    $region19: #{tpu_custom_call.1} parent=1 // pred_check_branch
      %2129 = sbr.rel (0) target = $region21
    $region20: #{tpu_custom_call.1} parent=1 // pred_region
      %2130 = dma.done [#allocation4], 24576
    $region21: #{tpu_custom_call.1} parent=1 // pred_fallthru
      _
    %2131 = vsyncpa [#allocation3], 1
    %2132 = vsyncpa [#allocation4], 1

</llo_original>
